<compile_context>
chip_gen: v7x
topology: tpu7x:2x2x1
jax: 0.10.0
libtpu: 0.0.40
codegen_flags: <defaults>
</compile_context>

<pallas_src>
import jax
import jax.numpy as jnp
from jax import lax
from jax.experimental import pallas as pl
from jax.experimental.pallas import tpu as pltpu

CONV_K = 10
POOL_K = 5
D_FULL = 166                      # assembled feature width
D_X1 = 140                        # dense0 out
D_H1 = 200                        # dense1 out
D_H2 = 170                        # dense2 out
D_OUT = 133                       # output width
W = 256                           # lane-dense working width (conv/pool + output)
L_CONV1 = D_FULL - (CONV_K - 1)   # 157
L_POOL1 = L_CONV1 - (POOL_K - 1)  # 153
L_CONV2 = L_POOL1 - (CONV_K - 1)  # 144
L_POOL2 = L_CONV2 - (POOL_K - 1)  # 140  (== D_X1)

MAX_TN = 512                      # batch-tile rows; sweep 256..1024 (mult. of 8)


def convnet_kernel(xs_ref, s_ref, w0_ref,
                   t1_ref, cb1_ref, t2_ref, cb2_ref,
                   w1a_ref, w1b_ref, b1_ref,
                   w2_ref, b2_ref, wo_ref, bo_ref,
                   out_ref):
    """One batch tile of the whole forward pass, everything resident in VMEM.

    xs_ref : (TN, L_PAD) raw input features; column L_PAD-1 is a constant 1
             (bias lane) which carries the means and the dense0 bias.
    s_ref  : (L_PAD, W)  scatter matrix (BatchNorm scale + means folded in)
    w0_ref : (L_PAD, 140) dense0 pre-composed with the scatter (+ b0)
    t1/t2  : (W, W)      banded Toeplitz matrices for Conv1d(1, 1, 10)
    w1a/w1b:             split dense1 weights (conv path / dense0 path)
    out_ref: (TN, W)     lane-dense output; columns 133.. are zero
    """

    def mm(a, w_ref):
        # Cast activations to the (possibly bf16) weight dtype; f32 accumulate.
        # With f32 operands Mosaic's matmul matches the HIGHEST-precision
        # reference at 1e-3 (verified by the assert in __main__); bf16 operands
        # are the explicit perf trade-off.
        return jnp.dot(a.astype(w_ref.dtype), w_ref[...],
                       preferred_element_type=jnp.float32)

    def maxpool(v):
        # MaxPool1d(kernel=5, stride=1) as a log-tree of XLU lane rotations
        # (roll by W-k == roll by -k): 3 rolls + 3 maxes.
        # out[i] = max(v[i..i+4]); lanes past the valid pooled length pick up
        # wrapped / padded garbage and are killed by zero rows in the next
        # weight matrix.
        m1 = jnp.maximum(v, pltpu.roll(v, shift=W - 1, axis=1))
        m2 = jnp.maximum(m1, pltpu.roll(m1, shift=W - 2, axis=1))
        return jnp.maximum(m2, pltpu.roll(v, shift=W - 4, axis=1))

    xs = xs_ref[...]                                            # (TN, L_PAD)

    # Fused input assembly + BatchNorm + means (bias lane of xs selects the
    # means row of S).
    d = mm(xs, s_ref)                                           # (TN, W)
    x1 = mm(xs, w0_ref)                                         # dense0 (+b0), (TN, 140)

    h = jnp.maximum(d, 0.0)                                     # relu
    h = jnp.maximum(mm(h, t1_ref) + cb1_ref[...], 0.0)          # conv1 + relu
    h = maxpool(h)                                              # pool1 (valid 0..152)
    # dropout: eval-mode identity
    h = jnp.maximum(mm(h, t2_ref) + cb2_ref[...], 0.0)          # conv2 + relu (valid 0..143)
    h = maxpool(h)                                              # pool2 (valid 0..139)
    # dropout: eval-mode identity

    # dense1 over the (conv | x1) concat — without concatenating.
    h = jnp.maximum(mm(h, w1a_ref) + mm(x1, w1b_ref) + b1_ref[...], 0.0)   # (TN, 200)
    h = jnp.maximum(mm(h, w2_ref) + b2_ref[...], 0.0)                      # (TN, 170)
    out_ref[...] = mm(h, wo_ref) + bo_ref[...]                             # (TN, W)


def init_params(key):
    """Deterministic parameter init (PyTorch-style uniform(-1/sqrt(fan_in), .))."""
    ks = jax.random.split(key, 10)

    def linear(kw, kb, fan_in, fan_out):
        bound = 1.0 / jnp.sqrt(fan_in)
        w = jax.random.uniform(kw, (fan_in, fan_out), jnp.float32, -bound, bound)
        b = jax.random.uniform(kb, (1, fan_out), jnp.float32, -bound, bound)
        return w, b

    w0, b0 = linear(ks[0], ks[1], 166, 140)
    w1, b1 = linear(ks[2], ks[3], 280, 200)
    w2, b2 = linear(ks[4], ks[5], 200, 170)
    wo, bo = linear(ks[6], ks[7], 170, 133)
    cbound = 1.0 / jnp.sqrt(1.0 * CONV_K)
    cw = jax.random.uniform(ks[8], (CONV_K,), jnp.float32, -cbound, cbound)
    cb = jax.random.uniform(ks[9], (1,), jnp.float32, -cbound, cbound)
    return dict(w0=w0, b0=b0, w1=w1, b1=b1, w2=w2, b2=b2,
                wo=wo, bo=bo, cw=cw, cb=cb)


def pack_params(params, means, indices, *, use_bf16_mxu=True):
    """One-time restructuring of the PyTorch parameters into kernel operands.

    use_bf16_mxu=True (default): bf16 MXU operands, f32 accumulation — the
    performance path on v5e/v6e/v7x.  False: f32 operands, used as the
    correctness anchor vs the f32 HIGHEST-precision reference.
    """
    f32 = jnp.float32
    hp = lax.Precision.HIGHEST
    bn_scale = 1.0 / jnp.sqrt(1.0 + 1e-5)   # BatchNorm1d eval, default stats
    idx = jnp.asarray(indices, jnp.int32)
    n_feat = int(idx.shape[0])
    # Guards (silent corruption otherwise).
    assert bool(jnp.all((idx >= 0) & (idx < D_FULL))), "indices out of range"
    assert int(jnp.unique(idx).shape[0]) == n_feat, "indices must be unique"

    # +1 spare row for the constant-1 bias lane carrying means / dense0 bias.
    l_pad = -(-(n_feat + 1) // 128) * 128
    bias_row = l_pad - 1

    # Scatter matrix: d = xs1 @ S with xs1[:, bias_row] == 1.
    #   scattered lanes get bn_scale * x, other lanes (<166) get the means.
    s = (jnp.zeros((l_pad, W), f32)
         .at[jnp.arange(n_feat), idx].set(bn_scale)
         .at[bias_row, :D_FULL].set(means)
         .at[bias_row, idx].set(0.0))

    # dense0 pre-composed with the scatter: x1 = xs1 @ (S[:, :166] @ W0) (+ b0
    # folded into the bias row).  Precompute at HIGHEST precision.
    w0p = jnp.dot(s[:, :D_FULL], params["w0"], precision=hp)
    w0p = w0p.at[bias_row, :].add(params["b0"][0])

    # Banded Toeplitz matrices: (x @ T)[:, i] = sum_k x[:, i+k] * cw[k].
    def toeplitz(lout):
        t = jnp.zeros((W, W), f32)
        cols = jnp.arange(lout)
        for k in range(CONV_K):
            t = t.at[cols + k, cols].set(params["cw"][k])
        return t

    cb = params["cb"][0]
    t1 = toeplitz(L_CONV1)
    cb1 = jnp.zeros((1, W), f32).at[0, :L_CONV1].set(cb)
    t2 = toeplitz(L_CONV2)                              # rows >= 153 stay zero
    cb2 = jnp.zeros((1, W), f32).at[0, :L_CONV2].set(cb)

    w1a = jnp.zeros((W, D_H1), f32).at[:L_POOL2, :].set(params["w1"][:L_POOL2])
    w1b = params["w1"][L_POOL2:]                        # (140, 200), x1 path
    wop = jnp.zeros((D_H2, W), f32).at[:, :D_OUT].set(params["wo"])
    bop = jnp.zeros((1, W), f32).at[:, :D_OUT].set(params["bo"])

    mats = dict(s=s, w0=w0p, t1=t1, t2=t2, w1a=w1a, w1b=w1b,
                w2=params["w2"], wo=wop)
    if use_bf16_mxu:
        # bf16-native MXU on v5e/v6e/v7x: halves MXU passes and weight DMA.
        # Accumulation stays f32 (preferred_element_type); biases stay f32.
        mats = {k: v.astype(jnp.bfloat16) for k, v in mats.items()}

    return dict(cb1=cb1, cb2=cb2, b1=params["b1"], b2=params["b2"], bo=bop,
                **mats)


def _tile_n(n, max_tn=MAX_TN):
    """Batch-tile rows: multiple of 8, capped at max_tn, and >= 2 grid steps
    whenever the (padded) batch allows it so both v7x TensorCores get work."""
    n8 = -(-n // 8) * 8
    if n8 <= 8:
        return 8
    half = -(-(n8 // 2) // 8) * 8
    return max(8, min(max_tn, half))


@jax.jit
def convnet_forward(x, packed):
    """x: (N, 1, L) float32, L == len(indices). Returns (N, 1, 133) float32."""
    n, _, l_in = x.shape
    l_pad = packed["s"].shape[0]
    in_dtype = packed["s"].dtype        # bf16 input slab when MXU is bf16

    tn = _tile_n(n)
    n_pad = -(-n // tn) * tn
    xs = jnp.zeros((n_pad, l_pad), in_dtype)
    xs = xs.at[:n, :l_in].set(x[:, 0, :].astype(in_dtype))
    xs = xs.at[:n, l_pad - 1].set(1.0)     # bias lane (means + dense0 bias)

    operands = (xs, packed["s"], packed["w0"],
                packed["t1"], packed["cb1"], packed["t2"], packed["cb2"],
                packed["w1a"], packed["w1b"], packed["b1"],
                packed["w2"], packed["b2"], packed["wo"], packed["bo"])

    row_spec = lambda width: pl.BlockSpec((tn, width), lambda i: (i, 0))
    const_spec = lambda a: pl.BlockSpec(a.shape, lambda i: (0, 0))
    in_specs = [row_spec(l_pad)] + [const_spec(a) for a in operands[1:]]

    flops = 2 * n_pad * (l_pad * W + l_pad * D_X1 + 2 * W * W + W * D_H1
                         + D_X1 * D_H1 + D_H1 * D_H2 + D_H2 * W)
    bytes_accessed = int(sum(a.size * a.dtype.itemsize for a in operands)
                         + n_pad * W * 4)

    out = pl.pallas_call(
        convnet_kernel,
        grid=(n_pad // tn,),
        out_shape=jax.ShapeDtypeStruct((n_pad, W), jnp.float32),
        in_specs=in_specs,
        out_specs=row_spec(W),
        compiler_params=pltpu.CompilerParams(
            dimension_semantics=("parallel",),
            vmem_limit_bytes=48 * 1024 * 1024),
        cost_estimate=pl.CostEstimate(flops=flops, transcendentals=0,
                                      bytes_accessed=bytes_accessed),
    )(*operands)

    return out[:n, None, :D_OUT]


def reference_forward(x, means, indices, params):
    """Pure-JAX reference mirroring the PyTorch forward (eval mode)."""
    n = x.shape[0]
    hp = lax.Precision.HIGHEST
    xs = (x / jnp.sqrt(1.0 + 1e-5))[:, 0, :]
    d = jnp.broadcast_to(means[None, :], (n, D_FULL)).at[:, indices].set(xs)

    x1 = jnp.dot(d, params["w0"], precision=hp) + params["b0"]
    h = jnp.maximum(d, 0.0)

    def conv(v):
        lout = v.shape[1] - (CONV_K - 1)
        acc = sum(v[:, k:k + lout] * params["cw"][k] for k in range(CONV_K))
        return acc + params["cb"][0]

    def pool(v):
        lout = v.shape[1] - (POOL_K - 1)
        r = v[:, 0:lout]
        for k in range(1, POOL_K):
            r = jnp.maximum(r, v[:, k:k + lout])
        return r

    h = pool(jnp.maximum(conv(h), 0.0))
    h = pool(jnp.maximum(conv(h), 0.0))
    h = jnp.concatenate([h, x1], axis=1)
    h = jnp.maximum(jnp.dot(h, params["w1"], precision=hp) + params["b1"], 0.0)
    h = jnp.maximum(jnp.dot(h, params["w2"], precision=hp) + params["b2"], 0.0)
    out = jnp.dot(h, params["wo"], precision=hp) + params["bo"]
    return out[:, None, :]


if __name__ == "__main__":
    key = jax.random.PRNGKey(0)
    k_param, k_means, k_x = jax.random.split(key, 3)

    params = init_params(k_param)
    means = jax.random.normal(k_means, (D_FULL,), jnp.float32)
    indices = jnp.arange(0, 160, 2, dtype=jnp.int32)      # 80 feature positions
    L = int(indices.shape[0])

    x = jax.random.normal(k_x, (2, 1, L), jnp.float32)    # (batch=2, C=1, L=80)

    ref = reference_forward(x, means, indices, params)

    # 1) f32 MXU operands: correctness anchor vs the HIGHEST-precision reference.
    packed_f32 = pack_params(params, means, indices, use_bf16_mxu=False)
    out_f32 = jax.block_until_ready(convnet_forward(x, packed_f32))
    assert out_f32.shape == (2, 1, 133), out_f32.shape
    assert jnp.allclose(out_f32, ref, rtol=1e-3, atol=1e-3), (
        "f32 path mismatch vs reference, max abs err = %g"
        % float(jnp.max(jnp.abs(out_f32 - ref))))

    # 2) bf16 MXU operands (default perf path on v5e/v6e/v7x): same structure,
    #    f32 accumulation; structural correctness is proven by (1), this check
    #    only bounds the bf16 rounding error.
    packed_bf16 = pack_params(params, means, indices)      # use_bf16_mxu=True
    out_bf16 = jax.block_until_ready(convnet_forward(x, packed_bf16))
    assert out_bf16.shape == (2, 1, 133), out_bf16.shape
    assert jnp.allclose(out_bf16, ref, rtol=1e-1, atol=1e-1), (
        "bf16 path mismatch vs reference, max abs err = %g"
        % float(jnp.max(jnp.abs(out_bf16 - ref))))

    print("KERNEL_OK")
</pallas_src>

<mosaic_0001>
module attributes {stable_mosaic.version = 11 : i64} {
  func.func @convnet_kernel(%arg0: i32, %arg1: memref<8x128xf32, #tpu.memory_space<vmem>>, %arg2: memref<128x256xf32, #tpu.memory_space<vmem>>, %arg3: memref<128x140xf32, #tpu.memory_space<vmem>>, %arg4: memref<256x256xf32, #tpu.memory_space<vmem>>, %arg5: memref<1x256xf32, #tpu.memory_space<vmem>>, %arg6: memref<256x256xf32, #tpu.memory_space<vmem>>, %arg7: memref<1x256xf32, #tpu.memory_space<vmem>>, %arg8: memref<256x200xf32, #tpu.memory_space<vmem>>, %arg9: memref<140x200xf32, #tpu.memory_space<vmem>>, %arg10: memref<1x200xf32, #tpu.memory_space<vmem>>, %arg11: memref<200x170xf32, #tpu.memory_space<vmem>>, %arg12: memref<1x170xf32, #tpu.memory_space<vmem>>, %arg13: memref<170x256xf32, #tpu.memory_space<vmem>>, %arg14: memref<1x256xf32, #tpu.memory_space<vmem>>, %arg15: memref<8x256xf32, #tpu.memory_space<vmem>>) attributes {dimension_semantics = [#tpu.dimension_semantics<parallel>], iteration_bounds = array<i64: 1>, scalar_prefetch = 0 : i64, scratch_operands = 0 : i64, tpu.core_type = #tpu.core_type<tc>, window_params = [{transform_indices = @transform_0, window_bounds = array<i64: 8, 128>}, {pipeline_mode = #tpu.pipeline_mode<synchronous>, transform_indices = @transform_1, window_bounds = array<i64: 128, 256>}, {pipeline_mode = #tpu.pipeline_mode<synchronous>, transform_indices = @transform_2, window_bounds = array<i64: 128, 140>}, {pipeline_mode = #tpu.pipeline_mode<synchronous>, transform_indices = @transform_3, window_bounds = array<i64: 256, 256>}, {pipeline_mode = #tpu.pipeline_mode<synchronous>, transform_indices = @transform_4, window_bounds = array<i64: 1, 256>}, {pipeline_mode = #tpu.pipeline_mode<synchronous>, transform_indices = @transform_5, window_bounds = array<i64: 256, 256>}, {pipeline_mode = #tpu.pipeline_mode<synchronous>, transform_indices = @transform_6, window_bounds = array<i64: 1, 256>}, {pipeline_mode = #tpu.pipeline_mode<synchronous>, transform_indices = @transform_7, window_bounds = array<i64: 256, 200>}, {pipeline_mode = #tpu.pipeline_mode<synchronous>, transform_indices = @transform_8, window_bounds = array<i64: 140, 200>}, {pipeline_mode = #tpu.pipeline_mode<synchronous>, transform_indices = @transform_9, window_bounds = array<i64: 1, 200>}, {pipeline_mode = #tpu.pipeline_mode<synchronous>, transform_indices = @transform_10, window_bounds = array<i64: 200, 170>}, {pipeline_mode = #tpu.pipeline_mode<synchronous>, transform_indices = @transform_11, window_bounds = array<i64: 1, 170>}, {pipeline_mode = #tpu.pipeline_mode<synchronous>, transform_indices = @transform_12, window_bounds = array<i64: 170, 256>}, {pipeline_mode = #tpu.pipeline_mode<synchronous>, transform_indices = @transform_13, window_bounds = array<i64: 1, 256>}, {transform_indices = @transform_14, window_bounds = array<i64: 8, 256>}]} {
    %c0 = arith.constant 0 : index
    %c0_0 = arith.constant 0 : index
    %0 = vector.load %arg1[%c0, %c0_0] : memref<8x128xf32, #tpu.memory_space<vmem>>, vector<8x128xf32>
    %c0_1 = arith.constant 0 : index
    %c0_2 = arith.constant 0 : index
    %1 = vector.load %arg2[%c0_1, %c0_2] : memref<128x256xf32, #tpu.memory_space<vmem>>, vector<128x256xf32>
    %cst = arith.constant dense<0.000000e+00> : vector<8x256xf32>
    %2 = tpu.matmul %0, %1, %cst {dimension_numbers = #tpu.dot_dimension_numbers<[1], [0], [0], [1], [0, 0, 1, 1], [], []>} : vector<8x128xf32>, vector<128x256xf32>, vector<8x256xf32> -> vector<8x256xf32>
    %c0_3 = arith.constant 0 : index
    %c0_4 = arith.constant 0 : index
    %3 = vector.load %arg3[%c0_3, %c0_4] : memref<128x140xf32, #tpu.memory_space<vmem>>, vector<128x140xf32>
    %cst_5 = arith.constant dense<0.000000e+00> : vector<8x140xf32>
    %4 = tpu.matmul %0, %3, %cst_5 {dimension_numbers = #tpu.dot_dimension_numbers<[1], [0], [0], [1], [0, 0, 1, 1], [], []>} : vector<8x128xf32>, vector<128x140xf32>, vector<8x140xf32> -> vector<8x140xf32>
    %cst_6 = arith.constant 0.000000e+00 : f32
    %5 = vector.broadcast %cst_6 : f32 to vector<8x256xf32>
    %6 = arith.maximumf %2, %5 : vector<8x256xf32>
    %c0_7 = arith.constant 0 : index
    %c0_8 = arith.constant 0 : index
    %7 = vector.load %arg4[%c0_7, %c0_8] : memref<256x256xf32, #tpu.memory_space<vmem>>, vector<256x256xf32>
    %cst_9 = arith.constant dense<0.000000e+00> : vector<8x256xf32>
    %8 = tpu.matmul %6, %7, %cst_9 {dimension_numbers = #tpu.dot_dimension_numbers<[1], [0], [0], [1], [0, 0, 1, 1], [], []>} : vector<8x256xf32>, vector<256x256xf32>, vector<8x256xf32> -> vector<8x256xf32>
    %c0_10 = arith.constant 0 : index
    %c0_11 = arith.constant 0 : index
    %9 = vector.load %arg5[%c0_10, %c0_11] : memref<1x256xf32, #tpu.memory_space<vmem>>, vector<1x256xf32>
    %10 = vector.broadcast %9 : vector<1x256xf32> to vector<8x256xf32>
    %11 = arith.addf %8, %10 : vector<8x256xf32>
    %cst_12 = arith.constant 0.000000e+00 : f32
    %12 = vector.broadcast %cst_12 : f32 to vector<8x256xf32>
    %13 = arith.maximumf %11, %12 : vector<8x256xf32>
    %c255_i32 = arith.constant 255 : i32
    %14 = tpu.dynamic_rotate %13 by %c255_i32 dim 1 : vector<8x256xf32>, i32 -> vector<8x256xf32>
    %15 = arith.maximumf %13, %14 : vector<8x256xf32>
    %c254_i32 = arith.constant 254 : i32
    %16 = tpu.dynamic_rotate %15 by %c254_i32 dim 1 : vector<8x256xf32>, i32 -> vector<8x256xf32>
    %17 = arith.maximumf %15, %16 : vector<8x256xf32>
    %c252_i32 = arith.constant 252 : i32
    %18 = tpu.dynamic_rotate %13 by %c252_i32 dim 1 : vector<8x256xf32>, i32 -> vector<8x256xf32>
    %19 = arith.maximumf %17, %18 : vector<8x256xf32>
    %c0_13 = arith.constant 0 : index
    %c0_14 = arith.constant 0 : index
    %20 = vector.load %arg6[%c0_13, %c0_14] : memref<256x256xf32, #tpu.memory_space<vmem>>, vector<256x256xf32>
    %cst_15 = arith.constant dense<0.000000e+00> : vector<8x256xf32>
    %21 = tpu.matmul %19, %20, %cst_15 {dimension_numbers = #tpu.dot_dimension_numbers<[1], [0], [0], [1], [0, 0, 1, 1], [], []>} : vector<8x256xf32>, vector<256x256xf32>, vector<8x256xf32> -> vector<8x256xf32>
    %c0_16 = arith.constant 0 : index
    %c0_17 = arith.constant 0 : index
    %22 = vector.load %arg7[%c0_16, %c0_17] : memref<1x256xf32, #tpu.memory_space<vmem>>, vector<1x256xf32>
    %23 = vector.broadcast %22 : vector<1x256xf32> to vector<8x256xf32>
    %24 = arith.addf %21, %23 : vector<8x256xf32>
    %cst_18 = arith.constant 0.000000e+00 : f32
    %25 = vector.broadcast %cst_18 : f32 to vector<8x256xf32>
    %26 = arith.maximumf %24, %25 : vector<8x256xf32>
    %c255_i32_19 = arith.constant 255 : i32
    %27 = tpu.dynamic_rotate %26 by %c255_i32_19 dim 1 : vector<8x256xf32>, i32 -> vector<8x256xf32>
    %28 = arith.maximumf %26, %27 : vector<8x256xf32>
    %c254_i32_20 = arith.constant 254 : i32
    %29 = tpu.dynamic_rotate %28 by %c254_i32_20 dim 1 : vector<8x256xf32>, i32 -> vector<8x256xf32>
    %30 = arith.maximumf %28, %29 : vector<8x256xf32>
    %c252_i32_21 = arith.constant 252 : i32
    %31 = tpu.dynamic_rotate %26 by %c252_i32_21 dim 1 : vector<8x256xf32>, i32 -> vector<8x256xf32>
    %32 = arith.maximumf %30, %31 : vector<8x256xf32>
    %c0_22 = arith.constant 0 : index
    %c0_23 = arith.constant 0 : index
    %33 = vector.load %arg8[%c0_22, %c0_23] : memref<256x200xf32, #tpu.memory_space<vmem>>, vector<256x200xf32>
    %cst_24 = arith.constant dense<0.000000e+00> : vector<8x200xf32>
    %34 = tpu.matmul %32, %33, %cst_24 {dimension_numbers = #tpu.dot_dimension_numbers<[1], [0], [0], [1], [0, 0, 1, 1], [], []>} : vector<8x256xf32>, vector<256x200xf32>, vector<8x200xf32> -> vector<8x200xf32>
    %c0_25 = arith.constant 0 : index
    %c0_26 = arith.constant 0 : index
    %35 = vector.load %arg9[%c0_25, %c0_26] : memref<140x200xf32, #tpu.memory_space<vmem>>, vector<140x200xf32>
    %cst_27 = arith.constant dense<0.000000e+00> : vector<8x200xf32>
    %36 = tpu.matmul %4, %35, %cst_27 {dimension_numbers = #tpu.dot_dimension_numbers<[1], [0], [0], [1], [0, 0, 1, 1], [], []>} : vector<8x140xf32>, vector<140x200xf32>, vector<8x200xf32> -> vector<8x200xf32>
    %37 = arith.addf %34, %36 : vector<8x200xf32>
    %c0_28 = arith.constant 0 : index
    %c0_29 = arith.constant 0 : index
    %38 = vector.load %arg10[%c0_28, %c0_29] : memref<1x200xf32, #tpu.memory_space<vmem>>, vector<1x200xf32>
    %39 = vector.broadcast %38 : vector<1x200xf32> to vector<8x200xf32>
    %40 = arith.addf %37, %39 : vector<8x200xf32>
    %cst_30 = arith.constant 0.000000e+00 : f32
    %41 = vector.broadcast %cst_30 : f32 to vector<8x200xf32>
    %42 = arith.maximumf %40, %41 : vector<8x200xf32>
    %c0_31 = arith.constant 0 : index
    %c0_32 = arith.constant 0 : index
    %43 = vector.load %arg11[%c0_31, %c0_32] : memref<200x170xf32, #tpu.memory_space<vmem>>, vector<200x170xf32>
    %cst_33 = arith.constant dense<0.000000e+00> : vector<8x170xf32>
    %44 = tpu.matmul %42, %43, %cst_33 {dimension_numbers = #tpu.dot_dimension_numbers<[1], [0], [0], [1], [0, 0, 1, 1], [], []>} : vector<8x200xf32>, vector<200x170xf32>, vector<8x170xf32> -> vector<8x170xf32>
    %c0_34 = arith.constant 0 : index
    %c0_35 = arith.constant 0 : index
    %45 = vector.load %arg12[%c0_34, %c0_35] : memref<1x170xf32, #tpu.memory_space<vmem>>, vector<1x170xf32>
    %46 = vector.broadcast %45 : vector<1x170xf32> to vector<8x170xf32>
    %47 = arith.addf %44, %46 : vector<8x170xf32>
    %cst_36 = arith.constant 0.000000e+00 : f32
    %48 = vector.broadcast %cst_36 : f32 to vector<8x170xf32>
    %49 = arith.maximumf %47, %48 : vector<8x170xf32>
    %c0_37 = arith.constant 0 : index
    %c0_38 = arith.constant 0 : index
    %50 = vector.load %arg13[%c0_37, %c0_38] : memref<170x256xf32, #tpu.memory_space<vmem>>, vector<170x256xf32>
    %cst_39 = arith.constant dense<0.000000e+00> : vector<8x256xf32>
    %51 = tpu.matmul %49, %50, %cst_39 {dimension_numbers = #tpu.dot_dimension_numbers<[1], [0], [0], [1], [0, 0, 1, 1], [], []>} : vector<8x170xf32>, vector<170x256xf32>, vector<8x256xf32> -> vector<8x256xf32>
    %c0_40 = arith.constant 0 : index
    %c0_41 = arith.constant 0 : index
    %52 = vector.load %arg14[%c0_40, %c0_41] : memref<1x256xf32, #tpu.memory_space<vmem>>, vector<1x256xf32>
    %53 = vector.broadcast %52 : vector<1x256xf32> to vector<8x256xf32>
    %54 = arith.addf %51, %53 : vector<8x256xf32>
    %c0_42 = arith.constant 0 : index
    %c0_43 = arith.constant 0 : index
    %55 = vector.load %arg15[%c0_42, %c0_43] : memref<8x256xf32, #tpu.memory_space<vmem>>, vector<8x256xf32>
    tpu.vector_store %arg15[%c0_42, %c0_43], %54 {strides = array<i32>} : memref<8x256xf32, #tpu.memory_space<vmem>>, vector<8x256xf32>,
    return
  }
  func.func @transform_0(%arg0: i32) -> (i32, i32) {
    %c0_i32 = arith.constant 0 : i32
    %c0_i32_0 = arith.constant 0 : i32
    return %arg0, %c0_i32 : i32, i32
  }
  func.func @transform_1(%arg0: i32) -> (i32, i32) {
    %c0_i32 = arith.constant 0 : i32
    %c0_i32_0 = arith.constant 0 : i32
    %c0_i32_1 = arith.constant 0 : i32
    return %c0_i32, %c0_i32_0 : i32, i32
  }
  func.func @transform_2(%arg0: i32) -> (i32, i32) {
    %c0_i32 = arith.constant 0 : i32
    %c0_i32_0 = arith.constant 0 : i32
    %c0_i32_1 = arith.constant 0 : i32
    return %c0_i32, %c0_i32_0 : i32, i32
  }
  func.func @transform_3(%arg0: i32) -> (i32, i32) {
    %c0_i32 = arith.constant 0 : i32
    %c0_i32_0 = arith.constant 0 : i32
    %c0_i32_1 = arith.constant 0 : i32
    return %c0_i32, %c0_i32_0 : i32, i32
  }
  func.func @transform_4(%arg0: i32) -> (i32, i32) {
    %c0_i32 = arith.constant 0 : i32
    %c0_i32_0 = arith.constant 0 : i32
    %c0_i32_1 = arith.constant 0 : i32
    return %c0_i32, %c0_i32_0 : i32, i32
  }
  func.func @transform_5(%arg0: i32) -> (i32, i32) {
    %c0_i32 = arith.constant 0 : i32
    %c0_i32_0 = arith.constant 0 : i32
    %c0_i32_1 = arith.constant 0 : i32
    return %c0_i32, %c0_i32_0 : i32, i32
  }
  func.func @transform_6(%arg0: i32) -> (i32, i32) {
    %c0_i32 = arith.constant 0 : i32
    %c0_i32_0 = arith.constant 0 : i32
    %c0_i32_1 = arith.constant 0 : i32
    return %c0_i32, %c0_i32_0 : i32, i32
  }
  func.func @transform_7(%arg0: i32) -> (i32, i32) {
    %c0_i32 = arith.constant 0 : i32
    %c0_i32_0 = arith.constant 0 : i32
    %c0_i32_1 = arith.constant 0 : i32
    return %c0_i32, %c0_i32_0 : i32, i32
  }
  func.func @transform_8(%arg0: i32) -> (i32, i32) {
    %c0_i32 = arith.constant 0 : i32
    %c0_i32_0 = arith.constant 0 : i32
    %c0_i32_1 = arith.constant 0 : i32
    return %c0_i32, %c0_i32_0 : i32, i32
  }
  func.func @transform_9(%arg0: i32) -> (i32, i32) {
    %c0_i32 = arith.constant 0 : i32
    %c0_i32_0 = arith.constant 0 : i32
    %c0_i32_1 = arith.constant 0 : i32
    return %c0_i32, %c0_i32_0 : i32, i32
  }
  func.func @transform_10(%arg0: i32) -> (i32, i32) {
    %c0_i32 = arith.constant 0 : i32
    %c0_i32_0 = arith.constant 0 : i32
    %c0_i32_1 = arith.constant 0 : i32
    return %c0_i32, %c0_i32_0 : i32, i32
  }
  func.func @transform_11(%arg0: i32) -> (i32, i32) {
    %c0_i32 = arith.constant 0 : i32
    %c0_i32_0 = arith.constant 0 : i32
    %c0_i32_1 = arith.constant 0 : i32
    return %c0_i32, %c0_i32_0 : i32, i32
  }
  func.func @transform_12(%arg0: i32) -> (i32, i32) {
    %c0_i32 = arith.constant 0 : i32
    %c0_i32_0 = arith.constant 0 : i32
    %c0_i32_1 = arith.constant 0 : i32
    return %c0_i32, %c0_i32_0 : i32, i32
  }
  func.func @transform_13(%arg0: i32) -> (i32, i32) {
    %c0_i32 = arith.constant 0 : i32
    %c0_i32_0 = arith.constant 0 : i32
    %c0_i32_1 = arith.constant 0 : i32
    return %c0_i32, %c0_i32_0 : i32, i32
  }
  func.func @transform_14(%arg0: i32) -> (i32, i32) {
    %c0_i32 = arith.constant 0 : i32
    %c0_i32_0 = arith.constant 0 : i32
    return %arg0, %c0_i32 : i32, i32
  }
}

</mosaic_0001>

<llo_original>
// kernel: convnet_forward.1
$region0: #{convnet_forward.1}
  #allocation0 [shape = 'u32[]', space=smem, size = 0x4, offset = 0x4, fixed_abs, tag = 'smem constant byte address 0x4 - core index']
  #allocation1 [shape = 'u32[144,128]{1,0:T(1,128)}', space=vmem, size = 0x12000, scoped, tag = 'internal scratch']
  %s0 = inlined_call_operand.vmem [shape: f32[8,128], index: 0, kind: input, shape index: {}]
  %s1 = inlined_call_operand.hbm [shape: f32[128,256], index: 1, kind: input, shape index: {}]
  %s2 = inlined_call_operand.vmem [shape: f32[128,140], index: 2, kind: input, shape index: {}]
  %s3 = inlined_call_operand.vmem [shape: f32[256,256], index: 3, kind: input, shape index: {}]
  %s4 = inlined_call_operand.vmem [shape: f32[1,256], index: 4, kind: input, shape index: {}]
  %s5 = inlined_call_operand.vmem [shape: f32[256,256], index: 5, kind: input, shape index: {}]
  %s6 = inlined_call_operand.vmem [shape: f32[1,256], index: 6, kind: input, shape index: {}]
  %s7 = inlined_call_operand.vmem [shape: f32[256,200], index: 7, kind: input, shape index: {}]
  %s8 = inlined_call_operand.hbm [shape: f32[140,200], index: 8, kind: input, shape index: {}]
  %s9 = inlined_call_operand.vmem [shape: f32[1,200], index: 9, kind: input, shape index: {}]
  %s10 = inlined_call_operand.vmem [shape: f32[200,170], index: 10, kind: input, shape index: {}]
  %s11 = inlined_call_operand.vmem [shape: f32[1,170], index: 11, kind: input, shape index: {}]
  %s12 = inlined_call_operand.vmem [shape: f32[170,256], index: 12, kind: input, shape index: {}]
  %s13 = inlined_call_operand.vmem [shape: f32[1,256], index: 13, kind: input, shape index: {}]
  %s14 = inlined_call_operand.vmem [shape: f32[8,256], index: 14, kind: output, shape index: {}]
  %s15 = sld [smem:[#allocation0]]
  $region74: #{convnet_forward.1} parent=0
    _
  %s17 = ssub.s32 1, %s15
  %s18 = scalar_select 0, %s17, %s15
  $region1: #{convnet_forward.1} parent=0
    #allocation2 [shape = 'u8[131072]{0}', space=vmem, size = 0x20000, scoped, tag = 'input window, operand 1, single buffered']
    #allocation3 [shape = 's32[1]{0}', space=sflag, size = 0x4, scoped, tag = 'scoped memory for convnet_forward.1']
    #allocation4 [shape = 'u8[147456]{0}', space=vmem, size = 0x24000, scoped, tag = 'input window, operand 8, single buffered']
    #allocation5 [shape = 's32[1]{0}', space=sflag, size = 0x4, scoped, tag = 'scoped memory for convnet_forward.1']
    %19 = vsyncpa [#allocation3], 0
    %20 = vsyncpa [#allocation5], 0
    // Predicated region
    $region2: #{convnet_forward.1} parent=1 // pred_check
      _
    $region3: #{convnet_forward.1} parent=1 // pred_check_branch
      %22 = sbr.rel (0) target = $region5
    $region4: #{convnet_forward.1} parent=1 // pred_region
      _
    $region5: #{convnet_forward.1} parent=1 // pred_fallthru
      _
    // Predicated region
    $region6: #{convnet_forward.1} parent=1 // pred_check
      _
    $region7: #{convnet_forward.1} parent=1 // pred_check_branch
      %24 = sbr.rel (0) target = $region9
    $region8: #{convnet_forward.1} parent=1 // pred_region
      %s26 = ssub.s32 4096, 4096
      %27 = vsyncadd [#allocation3], %s26
      %s28 = sshll.u32 [#allocation2], 4
      %s29 = int_to_ptr.vmem [resolvable:$true] %s28
      %34 = dma.hbm_to_vmem [thread:$0]  %s1, 4096, %s29, [#allocation3], 256, 256, 16
    $region9: #{convnet_forward.1} parent=1 // pred_fallthru
      _
    // Predicated region
    $region10: #{convnet_forward.1} parent=1 // pred_check
      _
    $region11: #{convnet_forward.1} parent=1 // pred_check_branch
      %36 = sbr.rel (0) target = $region13
    $region12: #{convnet_forward.1} parent=1 // pred_region
      _
    $region13: #{convnet_forward.1} parent=1 // pred_fallthru
      _
    // Predicated region
    $region14: #{convnet_forward.1} parent=1 // pred_check
      _
    $region15: #{convnet_forward.1} parent=1 // pred_check_branch
      %38 = sbr.rel (0) target = $region17
    $region16: #{convnet_forward.1} parent=1 // pred_region
      _
    $region17: #{convnet_forward.1} parent=1 // pred_fallthru
      _
    // Predicated region
    $region18: #{convnet_forward.1} parent=1 // pred_check
      _
    $region19: #{convnet_forward.1} parent=1 // pred_check_branch
      %40 = sbr.rel (0) target = $region21
    $region20: #{convnet_forward.1} parent=1 // pred_region
      _
    $region21: #{convnet_forward.1} parent=1 // pred_fallthru
      _
    // Predicated region
    $region22: #{convnet_forward.1} parent=1 // pred_check
      _
    $region23: #{convnet_forward.1} parent=1 // pred_check_branch
      %42 = sbr.rel (0) target = $region25
    $region24: #{convnet_forward.1} parent=1 // pred_region
      _
    $region25: #{convnet_forward.1} parent=1 // pred_fallthru
      _
    // Predicated region
    $region26: #{convnet_forward.1} parent=1 // pred_check
      _
    $region27: #{convnet_forward.1} parent=1 // pred_check_branch
      %44 = sbr.rel (0) target = $region29
    $region28: #{convnet_forward.1} parent=1 // pred_region
      _
    $region29: #{convnet_forward.1} parent=1 // pred_fallthru
      _
    // Predicated region
    $region30: #{convnet_forward.1} parent=1 // pred_check
      _
    $region31: #{convnet_forward.1} parent=1 // pred_check_branch
      %46 = sbr.rel (0) target = $region33
    $region32: #{convnet_forward.1} parent=1 // pred_region
      _
    $region33: #{convnet_forward.1} parent=1 // pred_fallthru
      _
    // Predicated region
    $region34: #{convnet_forward.1} parent=1 // pred_check
      _
    $region35: #{convnet_forward.1} parent=1 // pred_check_branch
      %48 = sbr.rel (0) target = $region37
    $region36: #{convnet_forward.1} parent=1 // pred_region
      %s50 = ssub.s32 4608, 4608
      %51 = vsyncadd [#allocation5], %s50
      %s52 = sshll.u32 [#allocation4], 4
      %s53 = int_to_ptr.vmem [resolvable:$true] %s52
      %58 = dma.hbm_to_vmem [thread:$0]  %s8, 4608, %s53, [#allocation5], 256, 256, 16
    $region37: #{convnet_forward.1} parent=1 // pred_fallthru
      _
    // Predicated region
    $region38: #{convnet_forward.1} parent=1 // pred_check
      _
    $region39: #{convnet_forward.1} parent=1 // pred_check_branch
      %60 = sbr.rel (0) target = $region41
    $region40: #{convnet_forward.1} parent=1 // pred_region
      _
    $region41: #{convnet_forward.1} parent=1 // pred_fallthru
      _
    // Predicated region
    $region42: #{convnet_forward.1} parent=1 // pred_check
      _
    $region43: #{convnet_forward.1} parent=1 // pred_check_branch
      %62 = sbr.rel (0) target = $region45
    $region44: #{convnet_forward.1} parent=1 // pred_region
      _
    $region45: #{convnet_forward.1} parent=1 // pred_fallthru
      _
    // Predicated region
    $region46: #{convnet_forward.1} parent=1 // pred_check
      _
    $region47: #{convnet_forward.1} parent=1 // pred_check_branch
      %64 = sbr.rel (0) target = $region49
    $region48: #{convnet_forward.1} parent=1 // pred_region
      _
    $region49: #{convnet_forward.1} parent=1 // pred_fallthru
      _
    // Predicated region
    $region50: #{convnet_forward.1} parent=1 // pred_check
      _
    $region51: #{convnet_forward.1} parent=1 // pred_check_branch
      %66 = sbr.rel (0) target = $region53
    $region52: #{convnet_forward.1} parent=1 // pred_region
      _
    $region53: #{convnet_forward.1} parent=1 // pred_fallthru
      _
    // Predicated region
    $region54: #{convnet_forward.1} parent=1 // pred_check
      _
    $region55: #{convnet_forward.1} parent=1 // pred_check_branch
      %68 = sbr.rel (0) target = $region57
    $region56: #{convnet_forward.1} parent=1 // pred_region
      _
    $region57: #{convnet_forward.1} parent=1 // pred_fallthru
      _
    // Predicated region
    $region58: #{convnet_forward.1} parent=1 // pred_check
      _
    $region59: #{convnet_forward.1} parent=1 // pred_check_branch
      %70 = sbr.rel (0) target = $region61
    $region60: #{convnet_forward.1} parent=1 // pred_region
      %71 = dma.done [#allocation3], 4096
    $region61: #{convnet_forward.1} parent=1 // pred_fallthru
      _
    // Predicated region
    $region62: #{convnet_forward.1} parent=1 // pred_check
      _
    $region63: #{convnet_forward.1} parent=1 // pred_check_branch
      %73 = sbr.rel (0) target = $region65
    $region64: #{convnet_forward.1} parent=1 // pred_region
      %74 = dma.done [#allocation5], 4608
    $region65: #{convnet_forward.1} parent=1 // pred_fallthru
      _
    %v75 = vld [vmem:[%s0] sm:$0xff]
    %v76 = vld [vmem:[#allocation2] sm:$0xff]
    %v77 = vld [vmem:[#allocation2 + $0x8] sm:$0xff]
    %v78 = vld [vmem:[#allocation2 + $0x10] sm:$0xff]
    %v79 = vld [vmem:[#allocation2 + $0x18] sm:$0xff]
    %v80 = vld [vmem:[#allocation2 + $0x20] sm:$0xff]
    %v81 = vld [vmem:[#allocation2 + $0x28] sm:$0xff]
    %v82 = vld [vmem:[#allocation2 + $0x30] sm:$0xff]
    %v83 = vld [vmem:[#allocation2 + $0x38] sm:$0xff]
    %v84 = vld [vmem:[#allocation2 + $0x40] sm:$0xff]
    %v85 = vld [vmem:[#allocation2 + $0x48] sm:$0xff]
    %v86 = vld [vmem:[#allocation2 + $0x50] sm:$0xff]
    %v87 = vld [vmem:[#allocation2 + $0x58] sm:$0xff]
    %v88 = vld [vmem:[#allocation2 + $0x60] sm:$0xff]
    %v89 = vld [vmem:[#allocation2 + $0x68] sm:$0xff]
    %v90 = vld [vmem:[#allocation2 + $0x70] sm:$0xff]
    %v91 = vld [vmem:[#allocation2 + $0x78] sm:$0xff]
    %v92 = vld [vmem:[#allocation2 + $0x80] sm:$0xff]
    %v93 = vld [vmem:[#allocation2 + $0x88] sm:$0xff]
    %v94 = vld [vmem:[#allocation2 + $0x90] sm:$0xff]
    %v95 = vld [vmem:[#allocation2 + $0x98] sm:$0xff]
    %v96 = vld [vmem:[#allocation2 + $0xa0] sm:$0xff]
    %v97 = vld [vmem:[#allocation2 + $0xa8] sm:$0xff]
    %v98 = vld [vmem:[#allocation2 + $0xb0] sm:$0xff]
    %v99 = vld [vmem:[#allocation2 + $0xb8] sm:$0xff]
    %v100 = vld [vmem:[#allocation2 + $0xc0] sm:$0xff]
    %v101 = vld [vmem:[#allocation2 + $0xc8] sm:$0xff]
    %v102 = vld [vmem:[#allocation2 + $0xd0] sm:$0xff]
    %v103 = vld [vmem:[#allocation2 + $0xd8] sm:$0xff]
    %v104 = vld [vmem:[#allocation2 + $0xe0] sm:$0xff]
    %v105 = vld [vmem:[#allocation2 + $0xe8] sm:$0xff]
    %v106 = vld [vmem:[#allocation2 + $0xf0] sm:$0xff]
    %v107 = vld [vmem:[#allocation2 + $0xf8] sm:$0xff]
    %108 = vmatprep.subr.mxu0 %v77
    %109 = vmatpush1.msra.mxu0 %v76
    %110 = vmatprep.subr.mxu0 %v79
    %111 = vmatpush1.msra.mxu0 %v78
    %112 = vmatprep.subr.mxu0 %v81
    %113 = vmatpush1.msra.mxu0 %v80
    %114 = vmatprep.subr.mxu0 %v83
    %115 = vmatpush1.msra.mxu0 %v82
    %116 = vmatprep.subr.mxu0 %v85
    %117 = vmatpush1.msra.mxu0 %v84
    %118 = vmatprep.subr.mxu0 %v87
    %119 = vmatpush1.msra.mxu0 %v86
    %120 = vmatprep.subr.mxu0 %v89
    %121 = vmatpush1.msra.mxu0 %v88
    %122 = vmatprep.subr.mxu0 %v91
    %123 = vmatpush1.msra.mxu0 %v90
    %124 = vmatprep.subr.mxu0 %v93
    %125 = vmatpush1.msra.mxu0 %v92
    %126 = vmatprep.subr.mxu0 %v95
    %127 = vmatpush1.msra.mxu0 %v94
    %128 = vmatprep.subr.mxu0 %v97
    %129 = vmatpush1.msra.mxu0 %v96
    %130 = vmatprep.subr.mxu0 %v99
    %131 = vmatpush1.msra.mxu0 %v98
    %132 = vmatprep.subr.mxu0 %v101
    %133 = vmatpush1.msra.mxu0 %v100
    %134 = vmatprep.subr.mxu0 %v103
    %135 = vmatpush1.msra.mxu0 %v102
    %136 = vmatprep.subr.mxu0 %v105
    %137 = vmatpush1.msra.mxu0 %v104
    %138 = vmatprep.subr.mxu0 %v107
    %139 = vmatpush1.msra.mxu0 %v106
    %140 = vmatprep.subr.mxu0 0.0
    %141 = vmatpush1.msra.mxu0 0.0
    %142 = vmatprep.subr.mxu0 0.0
    %143 = vmatpush1.msra.mxu0 0.0
    %144 = vmatprep.subr.mxu0 0.0
    %145 = vmatpush1.msra.mxu0 0.0
    %146 = vmatprep.subr.mxu0 0.0
    %147 = vmatpush1.msra.mxu0 0.0
    %148 = vmatprep.subr.mxu0 0.0
    %149 = vmatpush1.msra.mxu0 0.0
    %150 = vmatprep.subr.mxu0 0.0
    %151 = vmatpush1.msra.mxu0 0.0
    %152 = vmatprep.subr.mxu0 0.0
    %153 = vmatpush1.msra.mxu0 0.0
    %154 = vmatprep.subr.mxu0 0.0
    %155 = vmatpush1.msra.mxu0 0.0
    %156 = vmatprep.subr.mxu0 0.0
    %157 = vmatpush1.msra.mxu0 0.0
    %158 = vmatprep.subr.mxu0 0.0
    %159 = vmatpush1.msra.mxu0 0.0
    %160 = vmatprep.subr.mxu0 0.0
    %161 = vmatpush1.msra.mxu0 0.0
    %162 = vmatprep.subr.mxu0 0.0
    %163 = vmatpush1.msra.mxu0 0.0
    %164 = vmatprep.subr.mxu0 0.0
    %165 = vmatpush1.msra.mxu0 0.0
    %166 = vmatprep.subr.mxu0 0.0
    %167 = vmatpush1.msra.mxu0 0.0
    %168 = vmatprep.subr.mxu0 0.0
    %169 = vmatpush1.msra.mxu0 0.0
    %170 = vmatprep.subr.mxu0 0.0
    %171 = vmatpush1.msra.mxu0 0.0
    %172 = vmatprep.mubr.f32.mxu0 0.0
    %173 = vmatmul.mubr.f32.gmra.mrb[0].mxu0 %v75
    %v174 = vpop.f32.mrb[0].mxu0
    %v175 = vadd.f32 0.0, %v174
    %v176 = vpop.f32.mrb[0].mxu0
    %v177 = vadd.f32 0.0, %v176
    %178 = vdwg.mxu0
    %v179 = vld [vmem:[%s2] sm:$0xff]
    %v180 = vld [vmem:[%s2 + $0x8] sm:$0xff]
    %v181 = vld [vmem:[%s2 + $0x10] sm:$0xff]
    %v182 = vld [vmem:[%s2 + $0x18] sm:$0xff]
    %v183 = vld [vmem:[%s2 + $0x20] sm:$0xff]
    %v184 = vld [vmem:[%s2 + $0x28] sm:$0xff]
    %v185 = vld [vmem:[%s2 + $0x30] sm:$0xff]
    %v186 = vld [vmem:[%s2 + $0x38] sm:$0xff]
    %v187 = vld [vmem:[%s2 + $0x40] sm:$0xff]
    %v188 = vld [vmem:[%s2 + $0x48] sm:$0xff]
    %v189 = vld [vmem:[%s2 + $0x50] sm:$0xff]
    %v190 = vld [vmem:[%s2 + $0x58] sm:$0xff]
    %v191 = vld [vmem:[%s2 + $0x60] sm:$0xff]
    %v192 = vld [vmem:[%s2 + $0x68] sm:$0xff]
    %v193 = vld [vmem:[%s2 + $0x70] sm:$0xff]
    %v194 = vld [vmem:[%s2 + $0x78] sm:$0xff]
    %v195 = vld [vmem:[%s2 + $0x80] sm:$0xff]
    %v196 = vld [vmem:[%s2 + $0x88] sm:$0xff]
    %v197 = vld [vmem:[%s2 + $0x90] sm:$0xff]
    %v198 = vld [vmem:[%s2 + $0x98] sm:$0xff]
    %v199 = vld [vmem:[%s2 + $0xa0] sm:$0xff]
    %v200 = vld [vmem:[%s2 + $0xa8] sm:$0xff]
    %v201 = vld [vmem:[%s2 + $0xb0] sm:$0xff]
    %v202 = vld [vmem:[%s2 + $0xb8] sm:$0xff]
    %v203 = vld [vmem:[%s2 + $0xc0] sm:$0xff]
    %v204 = vld [vmem:[%s2 + $0xc8] sm:$0xff]
    %v205 = vld [vmem:[%s2 + $0xd0] sm:$0xff]
    %v206 = vld [vmem:[%s2 + $0xd8] sm:$0xff]
    %v207 = vld [vmem:[%s2 + $0xe0] sm:$0xff]
    %v208 = vld [vmem:[%s2 + $0xe8] sm:$0xff]
    %v209 = vld [vmem:[%s2 + $0xf0] sm:$0xff]
    %v210 = vld [vmem:[%s2 + $0xf8] sm:$0xff]
    %211 = vmatprep.subr.mxu0 %v180
    %212 = vmatpush1.msra.mxu0 %v179
    %213 = vmatprep.subr.mxu0 %v182
    %214 = vmatpush1.msra.mxu0 %v181
    %215 = vmatprep.subr.mxu0 %v184
    %216 = vmatpush1.msra.mxu0 %v183
    %217 = vmatprep.subr.mxu0 %v186
    %218 = vmatpush1.msra.mxu0 %v185
    %219 = vmatprep.subr.mxu0 %v188
    %220 = vmatpush1.msra.mxu0 %v187
    %221 = vmatprep.subr.mxu0 %v190
    %222 = vmatpush1.msra.mxu0 %v189
    %223 = vmatprep.subr.mxu0 %v192
    %224 = vmatpush1.msra.mxu0 %v191
    %225 = vmatprep.subr.mxu0 %v194
    %226 = vmatpush1.msra.mxu0 %v193
    %227 = vmatprep.subr.mxu0 %v196
    %228 = vmatpush1.msra.mxu0 %v195
    %229 = vmatprep.subr.mxu0 %v198
    %230 = vmatpush1.msra.mxu0 %v197
    %231 = vmatprep.subr.mxu0 %v200
    %232 = vmatpush1.msra.mxu0 %v199
    %233 = vmatprep.subr.mxu0 %v202
    %234 = vmatpush1.msra.mxu0 %v201
    %235 = vmatprep.subr.mxu0 %v204
    %236 = vmatpush1.msra.mxu0 %v203
    %237 = vmatprep.subr.mxu0 %v206
    %238 = vmatpush1.msra.mxu0 %v205
    %239 = vmatprep.subr.mxu0 %v208
    %240 = vmatpush1.msra.mxu0 %v207
    %241 = vmatprep.subr.mxu0 %v210
    %242 = vmatpush1.msra.mxu0 %v209
    %243 = vmatprep.subr.mxu0 0.0
    %244 = vmatpush1.msra.mxu0 0.0
    %245 = vmatprep.subr.mxu0 0.0
    %246 = vmatpush1.msra.mxu0 0.0
    %247 = vmatprep.subr.mxu0 0.0
    %248 = vmatpush1.msra.mxu0 0.0
    %249 = vmatprep.subr.mxu0 0.0
    %250 = vmatpush1.msra.mxu0 0.0
    %251 = vmatprep.subr.mxu0 0.0
    %252 = vmatpush1.msra.mxu0 0.0
    %253 = vmatprep.subr.mxu0 0.0
    %254 = vmatpush1.msra.mxu0 0.0
    %255 = vmatprep.subr.mxu0 0.0
    %256 = vmatpush1.msra.mxu0 0.0
    %257 = vmatprep.subr.mxu0 0.0
    %258 = vmatpush1.msra.mxu0 0.0
    %259 = vmatprep.subr.mxu0 0.0
    %260 = vmatpush1.msra.mxu0 0.0
    %261 = vmatprep.subr.mxu0 0.0
    %262 = vmatpush1.msra.mxu0 0.0
    %263 = vmatprep.subr.mxu0 0.0
    %264 = vmatpush1.msra.mxu0 0.0
    %265 = vmatprep.subr.mxu0 0.0
    %266 = vmatpush1.msra.mxu0 0.0
    %267 = vmatprep.subr.mxu0 0.0
    %268 = vmatpush1.msra.mxu0 0.0
    %269 = vmatprep.subr.mxu0 0.0
    %270 = vmatpush1.msra.mxu0 0.0
    %271 = vmatprep.subr.mxu0 0.0
    %272 = vmatpush1.msra.mxu0 0.0
    %273 = vmatprep.subr.mxu0 0.0
    %274 = vmatpush1.msra.mxu0 0.0
    %275 = vmatprep.mubr.f32.mxu0 0.0
    %276 = vmatmul.mubr.f32.gmra.mrb[0].mxu0 %v75
    %v277 = vpop.f32.mrb[0].mxu0
    %v278 = vadd.f32 0.0, %v277
    %v279 = vpop.f32.mrb[0].mxu0
    %v280 = vadd.f32 0.0, %v279
    %281 = vdwg.mxu0
    %v282 = vmax.f32 %v175, 0.0
    %v283 = vmax.f32 %v177, 0.0
    %v284 = vld [vmem:[%s3] sm:$0xff]
    %v285 = vld [vmem:[%s3 + $0x8] sm:$0xff]
    %v286 = vld [vmem:[%s3 + $0x10] sm:$0xff]
    %v287 = vld [vmem:[%s3 + $0x18] sm:$0xff]
    %v288 = vld [vmem:[%s3 + $0x20] sm:$0xff]
    %v289 = vld [vmem:[%s3 + $0x28] sm:$0xff]
    %v290 = vld [vmem:[%s3 + $0x30] sm:$0xff]
    %v291 = vld [vmem:[%s3 + $0x38] sm:$0xff]
    %v292 = vld [vmem:[%s3 + $0x40] sm:$0xff]
    %v293 = vld [vmem:[%s3 + $0x48] sm:$0xff]
    %v294 = vld [vmem:[%s3 + $0x50] sm:$0xff]
    %v295 = vld [vmem:[%s3 + $0x58] sm:$0xff]
    %v296 = vld [vmem:[%s3 + $0x60] sm:$0xff]
    %v297 = vld [vmem:[%s3 + $0x68] sm:$0xff]
    %v298 = vld [vmem:[%s3 + $0x70] sm:$0xff]
    %v299 = vld [vmem:[%s3 + $0x78] sm:$0xff]
    %v300 = vld [vmem:[%s3 + $0x80] sm:$0xff]
    %v301 = vld [vmem:[%s3 + $0x88] sm:$0xff]
    %v302 = vld [vmem:[%s3 + $0x90] sm:$0xff]
    %v303 = vld [vmem:[%s3 + $0x98] sm:$0xff]
    %v304 = vld [vmem:[%s3 + $0xa0] sm:$0xff]
    %v305 = vld [vmem:[%s3 + $0xa8] sm:$0xff]
    %v306 = vld [vmem:[%s3 + $0xb0] sm:$0xff]
    %v307 = vld [vmem:[%s3 + $0xb8] sm:$0xff]
    %v308 = vld [vmem:[%s3 + $0xc0] sm:$0xff]
    %v309 = vld [vmem:[%s3 + $0xc8] sm:$0xff]
    %v310 = vld [vmem:[%s3 + $0xd0] sm:$0xff]
    %v311 = vld [vmem:[%s3 + $0xd8] sm:$0xff]
    %v312 = vld [vmem:[%s3 + $0xe0] sm:$0xff]
    %v313 = vld [vmem:[%s3 + $0xe8] sm:$0xff]
    %v314 = vld [vmem:[%s3 + $0xf0] sm:$0xff]
    %v315 = vld [vmem:[%s3 + $0xf8] sm:$0xff]
    %v316 = vld [vmem:[%s3 + $0x100] sm:$0xff]
    %v317 = vld [vmem:[%s3 + $0x108] sm:$0xff]
    %v318 = vld [vmem:[%s3 + $0x110] sm:$0xff]
    %v319 = vld [vmem:[%s3 + $0x118] sm:$0xff]
    %v320 = vld [vmem:[%s3 + $0x120] sm:$0xff]
    %v321 = vld [vmem:[%s3 + $0x128] sm:$0xff]
    %v322 = vld [vmem:[%s3 + $0x130] sm:$0xff]
    %v323 = vld [vmem:[%s3 + $0x138] sm:$0xff]
    %v324 = vld [vmem:[%s3 + $0x140] sm:$0xff]
    %v325 = vld [vmem:[%s3 + $0x148] sm:$0xff]
    %v326 = vld [vmem:[%s3 + $0x150] sm:$0xff]
    %v327 = vld [vmem:[%s3 + $0x158] sm:$0xff]
    %v328 = vld [vmem:[%s3 + $0x160] sm:$0xff]
    %v329 = vld [vmem:[%s3 + $0x168] sm:$0xff]
    %v330 = vld [vmem:[%s3 + $0x170] sm:$0xff]
    %v331 = vld [vmem:[%s3 + $0x178] sm:$0xff]
    %v332 = vld [vmem:[%s3 + $0x180] sm:$0xff]
    %v333 = vld [vmem:[%s3 + $0x188] sm:$0xff]
    %v334 = vld [vmem:[%s3 + $0x190] sm:$0xff]
    %v335 = vld [vmem:[%s3 + $0x198] sm:$0xff]
    %v336 = vld [vmem:[%s3 + $0x1a0] sm:$0xff]
    %v337 = vld [vmem:[%s3 + $0x1a8] sm:$0xff]
    %v338 = vld [vmem:[%s3 + $0x1b0] sm:$0xff]
    %v339 = vld [vmem:[%s3 + $0x1b8] sm:$0xff]
    %v340 = vld [vmem:[%s3 + $0x1c0] sm:$0xff]
    %v341 = vld [vmem:[%s3 + $0x1c8] sm:$0xff]
    %v342 = vld [vmem:[%s3 + $0x1d0] sm:$0xff]
    %v343 = vld [vmem:[%s3 + $0x1d8] sm:$0xff]
    %v344 = vld [vmem:[%s3 + $0x1e0] sm:$0xff]
    %v345 = vld [vmem:[%s3 + $0x1e8] sm:$0xff]
    %v346 = vld [vmem:[%s3 + $0x1f0] sm:$0xff]
    %v347 = vld [vmem:[%s3 + $0x1f8] sm:$0xff]
    %v348 = vld [vmem:[%s4] sm:$0x3]
    %v350 = vlaneseq
    %v351 = vshrl.u32 %v350, 7
    %v352 = vsub.s32 0, %v351
    %v353 = vrot.slane %v348, %v352
    %v354 = vlaneseq
    %v355 = vshrl.u32 %v354, 7
    %v356 = vsub.s32 1, %v355
    %v357 = vrot.slane %v348, %v356
    %360 = vmatprep.subr.mxu0 %v285
    %361 = vmatpush1.msra.mxu0 %v284
    %362 = vmatprep.subr.mxu0 %v287
    %363 = vmatpush1.msra.mxu0 %v286
    %364 = vmatprep.subr.mxu0 %v289
    %365 = vmatpush1.msra.mxu0 %v288
    %366 = vmatprep.subr.mxu0 %v291
    %367 = vmatpush1.msra.mxu0 %v290
    %368 = vmatprep.subr.mxu0 %v293
    %369 = vmatpush1.msra.mxu0 %v292
    %370 = vmatprep.subr.mxu0 %v295
    %371 = vmatpush1.msra.mxu0 %v294
    %372 = vmatprep.subr.mxu0 %v297
    %373 = vmatpush1.msra.mxu0 %v296
    %374 = vmatprep.subr.mxu0 %v299
    %375 = vmatpush1.msra.mxu0 %v298
    %376 = vmatprep.subr.mxu0 %v301
    %377 = vmatpush1.msra.mxu0 %v300
    %378 = vmatprep.subr.mxu0 %v303
    %379 = vmatpush1.msra.mxu0 %v302
    %380 = vmatprep.subr.mxu0 %v305
    %381 = vmatpush1.msra.mxu0 %v304
    %382 = vmatprep.subr.mxu0 %v307
    %383 = vmatpush1.msra.mxu0 %v306
    %384 = vmatprep.subr.mxu0 %v309
    %385 = vmatpush1.msra.mxu0 %v308
    %386 = vmatprep.subr.mxu0 %v311
    %387 = vmatpush1.msra.mxu0 %v310
    %388 = vmatprep.subr.mxu0 %v313
    %389 = vmatpush1.msra.mxu0 %v312
    %390 = vmatprep.subr.mxu0 %v315
    %391 = vmatpush1.msra.mxu0 %v314
    %392 = vmatprep.subr.mxu0 %v317
    %393 = vmatpush1.msra.mxu0 %v316
    %394 = vmatprep.subr.mxu0 %v319
    %395 = vmatpush1.msra.mxu0 %v318
    %396 = vmatprep.subr.mxu0 %v321
    %397 = vmatpush1.msra.mxu0 %v320
    %398 = vmatprep.subr.mxu0 %v323
    %399 = vmatpush1.msra.mxu0 %v322
    %400 = vmatprep.subr.mxu0 %v325
    %401 = vmatpush1.msra.mxu0 %v324
    %402 = vmatprep.subr.mxu0 %v327
    %403 = vmatpush1.msra.mxu0 %v326
    %404 = vmatprep.subr.mxu0 %v329
    %405 = vmatpush1.msra.mxu0 %v328
    %406 = vmatprep.subr.mxu0 %v331
    %407 = vmatpush1.msra.mxu0 %v330
    %408 = vmatprep.subr.mxu0 %v333
    %409 = vmatpush1.msra.mxu0 %v332
    %410 = vmatprep.subr.mxu0 %v335
    %411 = vmatpush1.msra.mxu0 %v334
    %412 = vmatprep.subr.mxu0 %v337
    %413 = vmatpush1.msra.mxu0 %v336
    %414 = vmatprep.subr.mxu0 %v339
    %415 = vmatpush1.msra.mxu0 %v338
    %416 = vmatprep.subr.mxu0 %v341
    %417 = vmatpush1.msra.mxu0 %v340
    %418 = vmatprep.subr.mxu0 %v343
    %419 = vmatpush1.msra.mxu0 %v342
    %420 = vmatprep.subr.mxu0 %v345
    %421 = vmatpush1.msra.mxu0 %v344
    %422 = vmatprep.subr.mxu0 %v347
    %423 = vmatpush1.msra.mxu0 %v346
    %424 = vmatprep.mubr.f32.mxu0 %v283
    %425 = vmatmul.mubr.f32.gmra.mrb[0].mxu0 %v282
    %v426 = vpop.f32.mrb[0].mxu0
    %v427 = vadd.f32 %v353, %v426
    %v428 = vpop.f32.mrb[0].mxu0
    %v429 = vadd.f32 %v357, %v428
    %430 = vdwg.mxu0
    %v431 = vmax.f32 %v427, 0.0
    %v432 = vmax.f32 %v429, 0.0
    %433 = vrot.lane.b32.xlu0 %v431, 127
    %v434 = vpop.permute.xlu0 %433
    %435 = vrot.lane.b32.xlu0 %v432, 127
    %v436 = vpop.permute.xlu0 %435
    %v437 = vlaneseq
    %v438 = vand.u32 %v437, 127
    %vm439 = vcmp.lt.s32.totalorder %v438, 127
    %v440 = vsel %vm439, %v434, %v436
    %v441 = vsel %vm439, %v436, %v434
    %v442 = vmax.f32 %v431, %v440
    %v443 = vmax.f32 %v432, %v441
    %444 = vrot.lane.b32.xlu0 %v442, 126
    %v445 = vpop.permute.xlu0 %444
    %446 = vrot.lane.b32.xlu0 %v443, 126
    %v447 = vpop.permute.xlu0 %446
    %vm448 = vcmp.lt.s32.totalorder %v438, 126
    %v449 = vsel %vm448, %v445, %v447
    %v450 = vsel %vm448, %v447, %v445
    %v451 = vmax.f32 %v442, %v449
    %v452 = vmax.f32 %v443, %v450
    %453 = vrot.lane.b32.xlu0 %v431, 124
    %v454 = vpop.permute.xlu0 %453
    %455 = vrot.lane.b32.xlu0 %v432, 124
    %v456 = vpop.permute.xlu0 %455
    %vm457 = vcmp.lt.s32.totalorder %v438, 124
    %v458 = vsel %vm457, %v454, %v456
    %v459 = vsel %vm457, %v456, %v454
    %v460 = vmax.f32 %v451, %v458
    %v461 = vmax.f32 %v452, %v459
    %v462 = vld [vmem:[%s5] sm:$0xff]
    %v463 = vld [vmem:[%s5 + $0x8] sm:$0xff]
    %v464 = vld [vmem:[%s5 + $0x10] sm:$0xff]
    %v465 = vld [vmem:[%s5 + $0x18] sm:$0xff]
    %v466 = vld [vmem:[%s5 + $0x20] sm:$0xff]
    %v467 = vld [vmem:[%s5 + $0x28] sm:$0xff]
    %v468 = vld [vmem:[%s5 + $0x30] sm:$0xff]
    %v469 = vld [vmem:[%s5 + $0x38] sm:$0xff]
    %v470 = vld [vmem:[%s5 + $0x40] sm:$0xff]
    %v471 = vld [vmem:[%s5 + $0x48] sm:$0xff]
    %v472 = vld [vmem:[%s5 + $0x50] sm:$0xff]
    %v473 = vld [vmem:[%s5 + $0x58] sm:$0xff]
    %v474 = vld [vmem:[%s5 + $0x60] sm:$0xff]
    %v475 = vld [vmem:[%s5 + $0x68] sm:$0xff]
    %v476 = vld [vmem:[%s5 + $0x70] sm:$0xff]
    %v477 = vld [vmem:[%s5 + $0x78] sm:$0xff]
    %v478 = vld [vmem:[%s5 + $0x80] sm:$0xff]
    %v479 = vld [vmem:[%s5 + $0x88] sm:$0xff]
    %v480 = vld [vmem:[%s5 + $0x90] sm:$0xff]
    %v481 = vld [vmem:[%s5 + $0x98] sm:$0xff]
    %v482 = vld [vmem:[%s5 + $0xa0] sm:$0xff]
    %v483 = vld [vmem:[%s5 + $0xa8] sm:$0xff]
    %v484 = vld [vmem:[%s5 + $0xb0] sm:$0xff]
    %v485 = vld [vmem:[%s5 + $0xb8] sm:$0xff]
    %v486 = vld [vmem:[%s5 + $0xc0] sm:$0xff]
    %v487 = vld [vmem:[%s5 + $0xc8] sm:$0xff]
    %v488 = vld [vmem:[%s5 + $0xd0] sm:$0xff]
    %v489 = vld [vmem:[%s5 + $0xd8] sm:$0xff]
    %v490 = vld [vmem:[%s5 + $0xe0] sm:$0xff]
    %v491 = vld [vmem:[%s5 + $0xe8] sm:$0xff]
    %v492 = vld [vmem:[%s5 + $0xf0] sm:$0xff]
    %v493 = vld [vmem:[%s5 + $0xf8] sm:$0xff]
    %v494 = vld [vmem:[%s5 + $0x100] sm:$0xff]
    %v495 = vld [vmem:[%s5 + $0x108] sm:$0xff]
    %v496 = vld [vmem:[%s5 + $0x110] sm:$0xff]
    %v497 = vld [vmem:[%s5 + $0x118] sm:$0xff]
    %v498 = vld [vmem:[%s5 + $0x120] sm:$0xff]
    %v499 = vld [vmem:[%s5 + $0x128] sm:$0xff]
    %v500 = vld [vmem:[%s5 + $0x130] sm:$0xff]
    %v501 = vld [vmem:[%s5 + $0x138] sm:$0xff]
    %v502 = vld [vmem:[%s5 + $0x140] sm:$0xff]
    %v503 = vld [vmem:[%s5 + $0x148] sm:$0xff]
    %v504 = vld [vmem:[%s5 + $0x150] sm:$0xff]
    %v505 = vld [vmem:[%s5 + $0x158] sm:$0xff]
    %v506 = vld [vmem:[%s5 + $0x160] sm:$0xff]
    %v507 = vld [vmem:[%s5 + $0x168] sm:$0xff]
    %v508 = vld [vmem:[%s5 + $0x170] sm:$0xff]
    %v509 = vld [vmem:[%s5 + $0x178] sm:$0xff]
    %v510 = vld [vmem:[%s5 + $0x180] sm:$0xff]
    %v511 = vld [vmem:[%s5 + $0x188] sm:$0xff]
    %v512 = vld [vmem:[%s5 + $0x190] sm:$0xff]
    %v513 = vld [vmem:[%s5 + $0x198] sm:$0xff]
    %v514 = vld [vmem:[%s5 + $0x1a0] sm:$0xff]
    %v515 = vld [vmem:[%s5 + $0x1a8] sm:$0xff]
    %v516 = vld [vmem:[%s5 + $0x1b0] sm:$0xff]
    %v517 = vld [vmem:[%s5 + $0x1b8] sm:$0xff]
    %v518 = vld [vmem:[%s5 + $0x1c0] sm:$0xff]
    %v519 = vld [vmem:[%s5 + $0x1c8] sm:$0xff]
    %v520 = vld [vmem:[%s5 + $0x1d0] sm:$0xff]
    %v521 = vld [vmem:[%s5 + $0x1d8] sm:$0xff]
    %v522 = vld [vmem:[%s5 + $0x1e0] sm:$0xff]
    %v523 = vld [vmem:[%s5 + $0x1e8] sm:$0xff]
    %v524 = vld [vmem:[%s5 + $0x1f0] sm:$0xff]
    %v525 = vld [vmem:[%s5 + $0x1f8] sm:$0xff]
    %v526 = vld [vmem:[%s6] sm:$0x3]
    %v528 = vlaneseq
    %v529 = vshrl.u32 %v528, 7
    %v530 = vsub.s32 0, %v529
    %v531 = vrot.slane %v526, %v530
    %v532 = vlaneseq
    %v533 = vshrl.u32 %v532, 7
    %v534 = vsub.s32 1, %v533
    %v535 = vrot.slane %v526, %v534
    %538 = vmatprep.subr.mxu0 %v463
    %539 = vmatpush1.msra.mxu0 %v462
    %540 = vmatprep.subr.mxu0 %v465
    %541 = vmatpush1.msra.mxu0 %v464
    %542 = vmatprep.subr.mxu0 %v467
    %543 = vmatpush1.msra.mxu0 %v466
    %544 = vmatprep.subr.mxu0 %v469
    %545 = vmatpush1.msra.mxu0 %v468
    %546 = vmatprep.subr.mxu0 %v471
    %547 = vmatpush1.msra.mxu0 %v470
    %548 = vmatprep.subr.mxu0 %v473
    %549 = vmatpush1.msra.mxu0 %v472
    %550 = vmatprep.subr.mxu0 %v475
    %551 = vmatpush1.msra.mxu0 %v474
    %552 = vmatprep.subr.mxu0 %v477
    %553 = vmatpush1.msra.mxu0 %v476
    %554 = vmatprep.subr.mxu0 %v479
    %555 = vmatpush1.msra.mxu0 %v478
    %556 = vmatprep.subr.mxu0 %v481
    %557 = vmatpush1.msra.mxu0 %v480
    %558 = vmatprep.subr.mxu0 %v483
    %559 = vmatpush1.msra.mxu0 %v482
    %560 = vmatprep.subr.mxu0 %v485
    %561 = vmatpush1.msra.mxu0 %v484
    %562 = vmatprep.subr.mxu0 %v487
    %563 = vmatpush1.msra.mxu0 %v486
    %564 = vmatprep.subr.mxu0 %v489
    %565 = vmatpush1.msra.mxu0 %v488
    %566 = vmatprep.subr.mxu0 %v491
    %567 = vmatpush1.msra.mxu0 %v490
    %568 = vmatprep.subr.mxu0 %v493
    %569 = vmatpush1.msra.mxu0 %v492
    %570 = vmatprep.subr.mxu0 %v495
    %571 = vmatpush1.msra.mxu0 %v494
    %572 = vmatprep.subr.mxu0 %v497
    %573 = vmatpush1.msra.mxu0 %v496
    %574 = vmatprep.subr.mxu0 %v499
    %575 = vmatpush1.msra.mxu0 %v498
    %576 = vmatprep.subr.mxu0 %v501
    %577 = vmatpush1.msra.mxu0 %v500
    %578 = vmatprep.subr.mxu0 %v503
    %579 = vmatpush1.msra.mxu0 %v502
    %580 = vmatprep.subr.mxu0 %v505
    %581 = vmatpush1.msra.mxu0 %v504
    %582 = vmatprep.subr.mxu0 %v507
    %583 = vmatpush1.msra.mxu0 %v506
    %584 = vmatprep.subr.mxu0 %v509
    %585 = vmatpush1.msra.mxu0 %v508
    %586 = vmatprep.subr.mxu0 %v511
    %587 = vmatpush1.msra.mxu0 %v510
    %588 = vmatprep.subr.mxu0 %v513
    %589 = vmatpush1.msra.mxu0 %v512
    %590 = vmatprep.subr.mxu0 %v515
    %591 = vmatpush1.msra.mxu0 %v514
    %592 = vmatprep.subr.mxu0 %v517
    %593 = vmatpush1.msra.mxu0 %v516
    %594 = vmatprep.subr.mxu0 %v519
    %595 = vmatpush1.msra.mxu0 %v518
    %596 = vmatprep.subr.mxu0 %v521
    %597 = vmatpush1.msra.mxu0 %v520
    %598 = vmatprep.subr.mxu0 %v523
    %599 = vmatpush1.msra.mxu0 %v522
    %600 = vmatprep.subr.mxu0 %v525
    %601 = vmatpush1.msra.mxu0 %v524
    %602 = vmatprep.mubr.f32.mxu0 %v461
    %603 = vmatmul.mubr.f32.gmra.mrb[0].mxu0 %v460
    %v604 = vpop.f32.mrb[0].mxu0
    %v605 = vadd.f32 %v531, %v604
    %v606 = vpop.f32.mrb[0].mxu0
    %v607 = vadd.f32 %v535, %v606
    %608 = vdwg.mxu0
    %v609 = vmax.f32 %v605, 0.0
    %v610 = vmax.f32 %v607, 0.0
    %611 = vrot.lane.b32.xlu0 %v609, 127
    %v612 = vpop.permute.xlu0 %611
    %613 = vrot.lane.b32.xlu0 %v610, 127
    %v614 = vpop.permute.xlu0 %613
    %v615 = vsel %vm439, %v612, %v614
    %v616 = vsel %vm439, %v614, %v612
    %v617 = vmax.f32 %v609, %v615
    %v618 = vmax.f32 %v610, %v616
    %619 = vrot.lane.b32.xlu0 %v617, 126
    %v620 = vpop.permute.xlu0 %619
    %621 = vrot.lane.b32.xlu0 %v618, 126
    %v622 = vpop.permute.xlu0 %621
    %v623 = vsel %vm448, %v620, %v622
    %v624 = vsel %vm448, %v622, %v620
    %v625 = vmax.f32 %v617, %v623
    %v626 = vmax.f32 %v618, %v624
    %627 = vrot.lane.b32.xlu0 %v609, 124
    %v628 = vpop.permute.xlu0 %627
    %629 = vrot.lane.b32.xlu0 %v610, 124
    %v630 = vpop.permute.xlu0 %629
    %v631 = vsel %vm457, %v628, %v630
    %v632 = vsel %vm457, %v630, %v628
    %v633 = vmax.f32 %v625, %v631
    %v634 = vmax.f32 %v626, %v632
    %v635 = vld [vmem:[%s7] sm:$0xff]
    %v636 = vld [vmem:[%s7 + $0x8] sm:$0xff]
    %v637 = vld [vmem:[%s7 + $0x10] sm:$0xff]
    %v638 = vld [vmem:[%s7 + $0x18] sm:$0xff]
    %v639 = vld [vmem:[%s7 + $0x20] sm:$0xff]
    %v640 = vld [vmem:[%s7 + $0x28] sm:$0xff]
    %v641 = vld [vmem:[%s7 + $0x30] sm:$0xff]
    %v642 = vld [vmem:[%s7 + $0x38] sm:$0xff]
    %v643 = vld [vmem:[%s7 + $0x40] sm:$0xff]
    %v644 = vld [vmem:[%s7 + $0x48] sm:$0xff]
    %v645 = vld [vmem:[%s7 + $0x50] sm:$0xff]
    %v646 = vld [vmem:[%s7 + $0x58] sm:$0xff]
    %v647 = vld [vmem:[%s7 + $0x60] sm:$0xff]
    %v648 = vld [vmem:[%s7 + $0x68] sm:$0xff]
    %v649 = vld [vmem:[%s7 + $0x70] sm:$0xff]
    %v650 = vld [vmem:[%s7 + $0x78] sm:$0xff]
    %v651 = vld [vmem:[%s7 + $0x80] sm:$0xff]
    %v652 = vld [vmem:[%s7 + $0x88] sm:$0xff]
    %v653 = vld [vmem:[%s7 + $0x90] sm:$0xff]
    %v654 = vld [vmem:[%s7 + $0x98] sm:$0xff]
    %v655 = vld [vmem:[%s7 + $0xa0] sm:$0xff]
    %v656 = vld [vmem:[%s7 + $0xa8] sm:$0xff]
    %v657 = vld [vmem:[%s7 + $0xb0] sm:$0xff]
    %v658 = vld [vmem:[%s7 + $0xb8] sm:$0xff]
    %v659 = vld [vmem:[%s7 + $0xc0] sm:$0xff]
    %v660 = vld [vmem:[%s7 + $0xc8] sm:$0xff]
    %v661 = vld [vmem:[%s7 + $0xd0] sm:$0xff]
    %v662 = vld [vmem:[%s7 + $0xd8] sm:$0xff]
    %v663 = vld [vmem:[%s7 + $0xe0] sm:$0xff]
    %v664 = vld [vmem:[%s7 + $0xe8] sm:$0xff]
    %v665 = vld [vmem:[%s7 + $0xf0] sm:$0xff]
    %v666 = vld [vmem:[%s7 + $0xf8] sm:$0xff]
    %v667 = vld [vmem:[%s7 + $0x100] sm:$0xff]
    %v668 = vld [vmem:[%s7 + $0x108] sm:$0xff]
    %v669 = vld [vmem:[%s7 + $0x110] sm:$0xff]
    %v670 = vld [vmem:[%s7 + $0x118] sm:$0xff]
    %v671 = vld [vmem:[%s7 + $0x120] sm:$0xff]
    %v672 = vld [vmem:[%s7 + $0x128] sm:$0xff]
    %v673 = vld [vmem:[%s7 + $0x130] sm:$0xff]
    %v674 = vld [vmem:[%s7 + $0x138] sm:$0xff]
    %v675 = vld [vmem:[%s7 + $0x140] sm:$0xff]
    %v676 = vld [vmem:[%s7 + $0x148] sm:$0xff]
    %v677 = vld [vmem:[%s7 + $0x150] sm:$0xff]
    %v678 = vld [vmem:[%s7 + $0x158] sm:$0xff]
    %v679 = vld [vmem:[%s7 + $0x160] sm:$0xff]
    %v680 = vld [vmem:[%s7 + $0x168] sm:$0xff]
    %v681 = vld [vmem:[%s7 + $0x170] sm:$0xff]
    %v682 = vld [vmem:[%s7 + $0x178] sm:$0xff]
    %v683 = vld [vmem:[%s7 + $0x180] sm:$0xff]
    %v684 = vld [vmem:[%s7 + $0x188] sm:$0xff]
    %v685 = vld [vmem:[%s7 + $0x190] sm:$0xff]
    %v686 = vld [vmem:[%s7 + $0x198] sm:$0xff]
    %v687 = vld [vmem:[%s7 + $0x1a0] sm:$0xff]
    %v688 = vld [vmem:[%s7 + $0x1a8] sm:$0xff]
    %v689 = vld [vmem:[%s7 + $0x1b0] sm:$0xff]
    %v690 = vld [vmem:[%s7 + $0x1b8] sm:$0xff]
    %v691 = vld [vmem:[%s7 + $0x1c0] sm:$0xff]
    %v692 = vld [vmem:[%s7 + $0x1c8] sm:$0xff]
    %v693 = vld [vmem:[%s7 + $0x1d0] sm:$0xff]
    %v694 = vld [vmem:[%s7 + $0x1d8] sm:$0xff]
    %v695 = vld [vmem:[%s7 + $0x1e0] sm:$0xff]
    %v696 = vld [vmem:[%s7 + $0x1e8] sm:$0xff]
    %v697 = vld [vmem:[%s7 + $0x1f0] sm:$0xff]
    %v698 = vld [vmem:[%s7 + $0x1f8] sm:$0xff]
    %v699 = vld [vmem:[#allocation4] sm:$0xff]
    %v700 = vld [vmem:[#allocation4 + $0x8] sm:$0xff]
    %v701 = vld [vmem:[#allocation4 + $0x10] sm:$0xff]
    %v702 = vld [vmem:[#allocation4 + $0x18] sm:$0xff]
    %v703 = vld [vmem:[#allocation4 + $0x20] sm:$0xff]
    %v704 = vld [vmem:[#allocation4 + $0x28] sm:$0xff]
    %v705 = vld [vmem:[#allocation4 + $0x30] sm:$0xff]
    %v706 = vld [vmem:[#allocation4 + $0x38] sm:$0xff]
    %v707 = vld [vmem:[#allocation4 + $0x40] sm:$0xff]
    %v708 = vld [vmem:[#allocation4 + $0x48] sm:$0xff]
    %v709 = vld [vmem:[#allocation4 + $0x50] sm:$0xff]
    %v710 = vld [vmem:[#allocation4 + $0x58] sm:$0xff]
    %v711 = vld [vmem:[#allocation4 + $0x60] sm:$0xff]
    %v712 = vld [vmem:[#allocation4 + $0x68] sm:$0xff]
    %v713 = vld [vmem:[#allocation4 + $0x70] sm:$0xff]
    %v714 = vld [vmem:[#allocation4 + $0x78] sm:$0xff]
    %v715 = vld [vmem:[#allocation4 + $0x80] sm:$0xff]
    %v716 = vld [vmem:[#allocation4 + $0x88] sm:$0xff]
    %v717 = vld [vmem:[#allocation4 + $0x90] sm:$0xff]
    %v718 = vld [vmem:[#allocation4 + $0x98] sm:$0xff]
    %v719 = vld [vmem:[#allocation4 + $0xa0] sm:$0xff]
    %v720 = vld [vmem:[#allocation4 + $0xa8] sm:$0xff]
    %v721 = vld [vmem:[#allocation4 + $0xb0] sm:$0xff]
    %v722 = vld [vmem:[#allocation4 + $0xb8] sm:$0xff]
    %v723 = vld [vmem:[#allocation4 + $0xc0] sm:$0xff]
    %v724 = vld [vmem:[#allocation4 + $0xc8] sm:$0xff]
    %v725 = vld [vmem:[#allocation4 + $0xd0] sm:$0xff]
    %v726 = vld [vmem:[#allocation4 + $0xd8] sm:$0xff]
    %v727 = vld [vmem:[#allocation4 + $0xe0] sm:$0xff]
    %v728 = vld [vmem:[#allocation4 + $0xe8] sm:$0xff]
    %v729 = vld [vmem:[#allocation4 + $0xf0] sm:$0xff]
    %v730 = vld [vmem:[#allocation4 + $0xf8] sm:$0xff]
    %v731 = vld [vmem:[#allocation4 + $0x100] sm:$0xff]
    %v732 = vld [vmem:[#allocation4 + $0x108] sm:$0xff]
    %v733 = vld [vmem:[#allocation4 + $0x110] sm:$0xf]
    %v734 = vld [vmem:[#allocation4 + $0x118] sm:$0xf]
    %vm735 = vcmask 97280
    %v737 = vsel %vm735, %v280, 0
    %vm739 = vcmask 1043456
    %v741 = vsel %vm739, %v733, 0
    %v744 = vsel %vm739, %v734, 0
    %746 = vmatprep.subr.mxu0 %v700
    %747 = vmatpush1.msra.mxu0 %v699
    %748 = vmatprep.subr.mxu0 %v702
    %749 = vmatpush1.msra.mxu0 %v701
    %750 = vmatprep.subr.mxu0 %v704
    %751 = vmatpush1.msra.mxu0 %v703
    %752 = vmatprep.subr.mxu0 %v706
    %753 = vmatpush1.msra.mxu0 %v705
    %754 = vmatprep.subr.mxu0 %v708
    %755 = vmatpush1.msra.mxu0 %v707
    %756 = vmatprep.subr.mxu0 %v710
    %757 = vmatpush1.msra.mxu0 %v709
    %758 = vmatprep.subr.mxu0 %v712
    %759 = vmatpush1.msra.mxu0 %v711
    %760 = vmatprep.subr.mxu0 %v714
    %761 = vmatpush1.msra.mxu0 %v713
    %762 = vmatprep.subr.mxu0 %v716
    %763 = vmatpush1.msra.mxu0 %v715
    %764 = vmatprep.subr.mxu0 %v718
    %765 = vmatpush1.msra.mxu0 %v717
    %766 = vmatprep.subr.mxu0 %v720
    %767 = vmatpush1.msra.mxu0 %v719
    %768 = vmatprep.subr.mxu0 %v722
    %769 = vmatpush1.msra.mxu0 %v721
    %770 = vmatprep.subr.mxu0 %v724
    %771 = vmatpush1.msra.mxu0 %v723
    %772 = vmatprep.subr.mxu0 %v726
    %773 = vmatpush1.msra.mxu0 %v725
    %774 = vmatprep.subr.mxu0 %v728
    %775 = vmatpush1.msra.mxu0 %v727
    %776 = vmatprep.subr.mxu0 %v730
    %777 = vmatpush1.msra.mxu0 %v729
    %778 = vmatprep.subr.mxu0 %v732
    %779 = vmatpush1.msra.mxu0 %v731
    %780 = vmatprep.subr.mxu0 %v744
    %781 = vmatpush1.msra.mxu0 %v741
    %782 = vmatprep.subr.mxu0 0.0
    %783 = vmatpush1.msra.mxu0 0.0
    %784 = vmatprep.subr.mxu0 0.0
    %785 = vmatpush1.msra.mxu0 0.0
    %786 = vmatprep.subr.mxu0 0.0
    %787 = vmatpush1.msra.mxu0 0.0
    %788 = vmatprep.subr.mxu0 0.0
    %789 = vmatpush1.msra.mxu0 0.0
    %790 = vmatprep.subr.mxu0 0.0
    %791 = vmatpush1.msra.mxu0 0.0
    %792 = vmatprep.subr.mxu0 0.0
    %793 = vmatpush1.msra.mxu0 0.0
    %794 = vmatprep.subr.mxu0 0.0
    %795 = vmatpush1.msra.mxu0 0.0
    %796 = vmatprep.subr.mxu0 0.0
    %797 = vmatpush1.msra.mxu0 0.0
    %798 = vmatprep.subr.mxu0 0.0
    %799 = vmatpush1.msra.mxu0 0.0
    %800 = vmatprep.subr.mxu0 0.0
    %801 = vmatpush1.msra.mxu0 0.0
    %802 = vmatprep.subr.mxu0 0.0
    %803 = vmatpush1.msra.mxu0 0.0
    %804 = vmatprep.subr.mxu0 0.0
    %805 = vmatpush1.msra.mxu0 0.0
    %806 = vmatprep.subr.mxu0 0.0
    %807 = vmatpush1.msra.mxu0 0.0
    %808 = vmatprep.subr.mxu0 0.0
    %809 = vmatpush1.msra.mxu0 0.0
    %810 = vmatprep.mubr.f32.mxu0 %v737
    %811 = vmatmul.mubr.f32.gmra.mrb[0].mxu0 %v278
    %v812 = vpop.f32.mrb[0].mxu0
    %v813 = vadd.f32 0.0, %v812
    %v814 = vpop.f32.mrb[0].mxu0
    %v815 = vadd.f32 0.0, %v814
    %816 = vdwg.mxu0
    %817 = vmatprep.subr.mxu0 %v636
    %818 = vmatpush1.msra.mxu0 %v635
    %819 = vmatprep.subr.mxu0 %v638
    %820 = vmatpush1.msra.mxu0 %v637
    %821 = vmatprep.subr.mxu0 %v640
    %822 = vmatpush1.msra.mxu0 %v639
    %823 = vmatprep.subr.mxu0 %v642
    %824 = vmatpush1.msra.mxu0 %v641
    %825 = vmatprep.subr.mxu0 %v644
    %826 = vmatpush1.msra.mxu0 %v643
    %827 = vmatprep.subr.mxu0 %v646
    %828 = vmatpush1.msra.mxu0 %v645
    %829 = vmatprep.subr.mxu0 %v648
    %830 = vmatpush1.msra.mxu0 %v647
    %831 = vmatprep.subr.mxu0 %v650
    %832 = vmatpush1.msra.mxu0 %v649
    %833 = vmatprep.subr.mxu0 %v652
    %834 = vmatpush1.msra.mxu0 %v651
    %835 = vmatprep.subr.mxu0 %v654
    %836 = vmatpush1.msra.mxu0 %v653
    %837 = vmatprep.subr.mxu0 %v656
    %838 = vmatpush1.msra.mxu0 %v655
    %839 = vmatprep.subr.mxu0 %v658
    %840 = vmatpush1.msra.mxu0 %v657
    %841 = vmatprep.subr.mxu0 %v660
    %842 = vmatpush1.msra.mxu0 %v659
    %843 = vmatprep.subr.mxu0 %v662
    %844 = vmatpush1.msra.mxu0 %v661
    %845 = vmatprep.subr.mxu0 %v664
    %846 = vmatpush1.msra.mxu0 %v663
    %847 = vmatprep.subr.mxu0 %v666
    %848 = vmatpush1.msra.mxu0 %v665
    %849 = vmatprep.subr.mxu0 %v668
    %850 = vmatpush1.msra.mxu0 %v667
    %851 = vmatprep.subr.mxu0 %v670
    %852 = vmatpush1.msra.mxu0 %v669
    %853 = vmatprep.subr.mxu0 %v672
    %854 = vmatpush1.msra.mxu0 %v671
    %855 = vmatprep.subr.mxu0 %v674
    %856 = vmatpush1.msra.mxu0 %v673
    %857 = vmatprep.subr.mxu0 %v676
    %858 = vmatpush1.msra.mxu0 %v675
    %859 = vmatprep.subr.mxu0 %v678
    %860 = vmatpush1.msra.mxu0 %v677
    %861 = vmatprep.subr.mxu0 %v680
    %862 = vmatpush1.msra.mxu0 %v679
    %863 = vmatprep.subr.mxu0 %v682
    %864 = vmatpush1.msra.mxu0 %v681
    %865 = vmatprep.subr.mxu0 %v684
    %866 = vmatpush1.msra.mxu0 %v683
    %867 = vmatprep.subr.mxu0 %v686
    %868 = vmatpush1.msra.mxu0 %v685
    %869 = vmatprep.subr.mxu0 %v688
    %870 = vmatpush1.msra.mxu0 %v687
    %871 = vmatprep.subr.mxu0 %v690
    %872 = vmatpush1.msra.mxu0 %v689
    %873 = vmatprep.subr.mxu0 %v692
    %874 = vmatpush1.msra.mxu0 %v691
    %875 = vmatprep.subr.mxu0 %v694
    %876 = vmatpush1.msra.mxu0 %v693
    %877 = vmatprep.subr.mxu0 %v696
    %878 = vmatpush1.msra.mxu0 %v695
    %879 = vmatprep.subr.mxu0 %v698
    %880 = vmatpush1.msra.mxu0 %v697
    %881 = vmatprep.mubr.f32.mxu0 %v634
    %882 = vmatmul.mubr.f32.gmra.mrb[0].mxu0 %v633
    %v883 = vpop.f32.mrb[0].mxu0
    %v884 = vadd.f32 %v813, %v883
    %v885 = vpop.f32.mrb[0].mxu0
    %v886 = vadd.f32 %v815, %v885
    %887 = vdwg.mxu0
    %v888 = vld [vmem:[%s9] sm:$0x3]
    %v890 = vlaneseq
    %v891 = vshrl.u32 %v890, 7
    %v892 = vsub.s32 0, %v891
    %v893 = vrot.slane %v888, %v892
    %v894 = vlaneseq
    %v895 = vshrl.u32 %v894, 7
    %v896 = vsub.s32 1, %v895
    %v897 = vrot.slane %v888, %v896
    %v900 = vadd.f32 %v884, %v893
    %v901 = vadd.f32 %v886, %v897
    %v902 = vmax.f32 %v900, 0.0
    %v903 = vmax.f32 %v901, 0.0
    %v904 = vld [vmem:[%s10] sm:$0xff]
    %v905 = vld [vmem:[%s10 + $0x8] sm:$0xff]
    %v906 = vld [vmem:[%s10 + $0x10] sm:$0xff]
    %v907 = vld [vmem:[%s10 + $0x18] sm:$0xff]
    %v908 = vld [vmem:[%s10 + $0x20] sm:$0xff]
    %v909 = vld [vmem:[%s10 + $0x28] sm:$0xff]
    %v910 = vld [vmem:[%s10 + $0x30] sm:$0xff]
    %v911 = vld [vmem:[%s10 + $0x38] sm:$0xff]
    %v912 = vld [vmem:[%s10 + $0x40] sm:$0xff]
    %v913 = vld [vmem:[%s10 + $0x48] sm:$0xff]
    %v914 = vld [vmem:[%s10 + $0x50] sm:$0xff]
    %v915 = vld [vmem:[%s10 + $0x58] sm:$0xff]
    %v916 = vld [vmem:[%s10 + $0x60] sm:$0xff]
    %v917 = vld [vmem:[%s10 + $0x68] sm:$0xff]
    %v918 = vld [vmem:[%s10 + $0x70] sm:$0xff]
    %v919 = vld [vmem:[%s10 + $0x78] sm:$0xff]
    %v920 = vld [vmem:[%s10 + $0x80] sm:$0xff]
    %v921 = vld [vmem:[%s10 + $0x88] sm:$0xff]
    %v922 = vld [vmem:[%s10 + $0x90] sm:$0xff]
    %v923 = vld [vmem:[%s10 + $0x98] sm:$0xff]
    %v924 = vld [vmem:[%s10 + $0xa0] sm:$0xff]
    %v925 = vld [vmem:[%s10 + $0xa8] sm:$0xff]
    %v926 = vld [vmem:[%s10 + $0xb0] sm:$0xff]
    %v927 = vld [vmem:[%s10 + $0xb8] sm:$0xff]
    %v928 = vld [vmem:[%s10 + $0xc0] sm:$0xff]
    %v929 = vld [vmem:[%s10 + $0xc8] sm:$0xff]
    %v930 = vld [vmem:[%s10 + $0xd0] sm:$0xff]
    %v931 = vld [vmem:[%s10 + $0xd8] sm:$0xff]
    %v932 = vld [vmem:[%s10 + $0xe0] sm:$0xff]
    %v933 = vld [vmem:[%s10 + $0xe8] sm:$0xff]
    %v934 = vld [vmem:[%s10 + $0xf0] sm:$0xff]
    %v935 = vld [vmem:[%s10 + $0xf8] sm:$0xff]
    %v936 = vld [vmem:[%s10 + $0x100] sm:$0xff]
    %v937 = vld [vmem:[%s10 + $0x108] sm:$0xff]
    %v938 = vld [vmem:[%s10 + $0x110] sm:$0xff]
    %v939 = vld [vmem:[%s10 + $0x118] sm:$0xff]
    %v940 = vld [vmem:[%s10 + $0x120] sm:$0xff]
    %v941 = vld [vmem:[%s10 + $0x128] sm:$0xff]
    %v942 = vld [vmem:[%s10 + $0x130] sm:$0xff]
    %v943 = vld [vmem:[%s10 + $0x138] sm:$0xff]
    %v944 = vld [vmem:[%s10 + $0x140] sm:$0xff]
    %v945 = vld [vmem:[%s10 + $0x148] sm:$0xff]
    %v946 = vld [vmem:[%s10 + $0x150] sm:$0xff]
    %v947 = vld [vmem:[%s10 + $0x158] sm:$0xff]
    %v948 = vld [vmem:[%s10 + $0x160] sm:$0xff]
    %v949 = vld [vmem:[%s10 + $0x168] sm:$0xff]
    %v950 = vld [vmem:[%s10 + $0x170] sm:$0xff]
    %v951 = vld [vmem:[%s10 + $0x178] sm:$0xff]
    %v952 = vld [vmem:[%s10 + $0x180] sm:$0xff]
    %v953 = vld [vmem:[%s10 + $0x188] sm:$0xff]
    %v954 = vld [vmem:[%s11] sm:$0x3]
    %v956 = vlaneseq
    %v957 = vshrl.u32 %v956, 7
    %v958 = vsub.s32 0, %v957
    %v959 = vrot.slane %v954, %v958
    %v960 = vlaneseq
    %v961 = vshrl.u32 %v960, 7
    %v962 = vsub.s32 1, %v961
    %v963 = vrot.slane %v954, %v962
    %vm966 = vcmask 588800
    %v968 = vsel %vm966, %v903, 0
    %970 = vmatprep.subr.mxu0 %v905
    %971 = vmatpush1.msra.mxu0 %v904
    %972 = vmatprep.subr.mxu0 %v907
    %973 = vmatpush1.msra.mxu0 %v906
    %974 = vmatprep.subr.mxu0 %v909
    %975 = vmatpush1.msra.mxu0 %v908
    %976 = vmatprep.subr.mxu0 %v911
    %977 = vmatpush1.msra.mxu0 %v910
    %978 = vmatprep.subr.mxu0 %v913
    %979 = vmatpush1.msra.mxu0 %v912
    %980 = vmatprep.subr.mxu0 %v915
    %981 = vmatpush1.msra.mxu0 %v914
    %982 = vmatprep.subr.mxu0 %v917
    %983 = vmatpush1.msra.mxu0 %v916
    %984 = vmatprep.subr.mxu0 %v919
    %985 = vmatpush1.msra.mxu0 %v918
    %986 = vmatprep.subr.mxu0 %v921
    %987 = vmatpush1.msra.mxu0 %v920
    %988 = vmatprep.subr.mxu0 %v923
    %989 = vmatpush1.msra.mxu0 %v922
    %990 = vmatprep.subr.mxu0 %v925
    %991 = vmatpush1.msra.mxu0 %v924
    %992 = vmatprep.subr.mxu0 %v927
    %993 = vmatpush1.msra.mxu0 %v926
    %994 = vmatprep.subr.mxu0 %v929
    %995 = vmatpush1.msra.mxu0 %v928
    %996 = vmatprep.subr.mxu0 %v931
    %997 = vmatpush1.msra.mxu0 %v930
    %998 = vmatprep.subr.mxu0 %v933
    %999 = vmatpush1.msra.mxu0 %v932
    %1000 = vmatprep.subr.mxu0 %v935
    %1001 = vmatpush1.msra.mxu0 %v934
    %1002 = vmatprep.subr.mxu0 %v937
    %1003 = vmatpush1.msra.mxu0 %v936
    %1004 = vmatprep.subr.mxu0 %v939
    %1005 = vmatpush1.msra.mxu0 %v938
    %1006 = vmatprep.subr.mxu0 %v941
    %1007 = vmatpush1.msra.mxu0 %v940
    %1008 = vmatprep.subr.mxu0 %v943
    %1009 = vmatpush1.msra.mxu0 %v942
    %1010 = vmatprep.subr.mxu0 %v945
    %1011 = vmatpush1.msra.mxu0 %v944
    %1012 = vmatprep.subr.mxu0 %v947
    %1013 = vmatpush1.msra.mxu0 %v946
    %1014 = vmatprep.subr.mxu0 %v949
    %1015 = vmatpush1.msra.mxu0 %v948
    %1016 = vmatprep.subr.mxu0 %v951
    %1017 = vmatpush1.msra.mxu0 %v950
    %1018 = vmatprep.subr.mxu0 %v953
    %1019 = vmatpush1.msra.mxu0 %v952
    %1020 = vmatprep.subr.mxu0 0.0
    %1021 = vmatpush1.msra.mxu0 0.0
    %1022 = vmatprep.subr.mxu0 0.0
    %1023 = vmatpush1.msra.mxu0 0.0
    %1024 = vmatprep.subr.mxu0 0.0
    %1025 = vmatpush1.msra.mxu0 0.0
    %1026 = vmatprep.subr.mxu0 0.0
    %1027 = vmatpush1.msra.mxu0 0.0
    %1028 = vmatprep.subr.mxu0 0.0
    %1029 = vmatpush1.msra.mxu0 0.0
    %1030 = vmatprep.subr.mxu0 0.0
    %1031 = vmatpush1.msra.mxu0 0.0
    %1032 = vmatprep.subr.mxu0 0.0
    %1033 = vmatpush1.msra.mxu0 0.0
    %1034 = vmatprep.mubr.f32.mxu0 %v968
    %1035 = vmatmul.mubr.f32.gmra.mrb[0].mxu0 %v902
    %v1036 = vpop.f32.mrb[0].mxu0
    %v1037 = vadd.f32 %v959, %v1036
    %v1038 = vpop.f32.mrb[0].mxu0
    %v1039 = vadd.f32 %v963, %v1038
    %1040 = vdwg.mxu0
    %v1041 = vmax.f32 %v1037, 0.0
    %v1042 = vmax.f32 %v1039, 0.0
    %v1043 = vld [vmem:[%s12] sm:$0xff]
    %v1044 = vld [vmem:[%s12 + $0x8] sm:$0xff]
    %v1045 = vld [vmem:[%s12 + $0x10] sm:$0xff]
    %v1046 = vld [vmem:[%s12 + $0x18] sm:$0xff]
    %v1047 = vld [vmem:[%s12 + $0x20] sm:$0xff]
    %v1048 = vld [vmem:[%s12 + $0x28] sm:$0xff]
    %v1049 = vld [vmem:[%s12 + $0x30] sm:$0xff]
    %v1050 = vld [vmem:[%s12 + $0x38] sm:$0xff]
    %v1051 = vld [vmem:[%s12 + $0x40] sm:$0xff]
    %v1052 = vld [vmem:[%s12 + $0x48] sm:$0xff]
    %v1053 = vld [vmem:[%s12 + $0x50] sm:$0xff]
    %v1054 = vld [vmem:[%s12 + $0x58] sm:$0xff]
    %v1055 = vld [vmem:[%s12 + $0x60] sm:$0xff]
    %v1056 = vld [vmem:[%s12 + $0x68] sm:$0xff]
    %v1057 = vld [vmem:[%s12 + $0x70] sm:$0xff]
    %v1058 = vld [vmem:[%s12 + $0x78] sm:$0xff]
    %v1059 = vld [vmem:[%s12 + $0x80] sm:$0xff]
    %v1060 = vld [vmem:[%s12 + $0x88] sm:$0xff]
    %v1061 = vld [vmem:[%s12 + $0x90] sm:$0xff]
    %v1062 = vld [vmem:[%s12 + $0x98] sm:$0xff]
    %v1063 = vld [vmem:[%s12 + $0xa0] sm:$0xff]
    %v1064 = vld [vmem:[%s12 + $0xa8] sm:$0xff]
    %v1065 = vld [vmem:[%s12 + $0xb0] sm:$0xff]
    %v1066 = vld [vmem:[%s12 + $0xb8] sm:$0xff]
    %v1067 = vld [vmem:[%s12 + $0xc0] sm:$0xff]
    %v1068 = vld [vmem:[%s12 + $0xc8] sm:$0xff]
    %v1069 = vld [vmem:[%s12 + $0xd0] sm:$0xff]
    %v1070 = vld [vmem:[%s12 + $0xd8] sm:$0xff]
    %v1071 = vld [vmem:[%s12 + $0xe0] sm:$0xff]
    %v1072 = vld [vmem:[%s12 + $0xe8] sm:$0xff]
    %v1073 = vld [vmem:[%s12 + $0xf0] sm:$0xff]
    %v1074 = vld [vmem:[%s12 + $0xf8] sm:$0xff]
    %v1075 = vld [vmem:[%s12 + $0x100] sm:$0xff]
    %v1076 = vld [vmem:[%s12 + $0x108] sm:$0xff]
    %v1077 = vld [vmem:[%s12 + $0x110] sm:$0xff]
    %v1078 = vld [vmem:[%s12 + $0x118] sm:$0xff]
    %v1079 = vld [vmem:[%s12 + $0x120] sm:$0xff]
    %v1080 = vld [vmem:[%s12 + $0x128] sm:$0xff]
    %v1081 = vld [vmem:[%s12 + $0x130] sm:$0xff]
    %v1082 = vld [vmem:[%s12 + $0x138] sm:$0xff]
    %v1083 = vld [vmem:[%s12 + $0x140] sm:$0xff]
    %v1084 = vld [vmem:[%s12 + $0x148] sm:$0xff]
    %v1085 = vld [vmem:[%s12 + $0x150] sm:$0x3]
    %v1086 = vld [vmem:[%s12 + $0x158] sm:$0x3]
    %v1087 = vld [vmem:[%s13] sm:$0x3]
    %v1089 = vlaneseq
    %v1090 = vshrl.u32 %v1089, 7
    %v1091 = vsub.s32 0, %v1090
    %v1092 = vrot.slane %v1087, %v1091
    %v1093 = vlaneseq
    %v1094 = vshrl.u32 %v1093, 7
    %v1095 = vsub.s32 1, %v1094
    %v1096 = vrot.slane %v1087, %v1095
    %vm1099 = vcmask 343040
    %v1101 = vsel %vm1099, %v1042, 0
    %vm1103 = vcmask 1041408
    %v1105 = vsel %vm1103, %v1085, 0
    %v1108 = vsel %vm1103, %v1086, 0
    %1110 = vmatprep.subr.mxu0 %v1044
    %1111 = vmatpush1.msra.mxu0 %v1043
    %1112 = vmatprep.subr.mxu0 %v1046
    %1113 = vmatpush1.msra.mxu0 %v1045
    %1114 = vmatprep.subr.mxu0 %v1048
    %1115 = vmatpush1.msra.mxu0 %v1047
    %1116 = vmatprep.subr.mxu0 %v1050
    %1117 = vmatpush1.msra.mxu0 %v1049
    %1118 = vmatprep.subr.mxu0 %v1052
    %1119 = vmatpush1.msra.mxu0 %v1051
    %1120 = vmatprep.subr.mxu0 %v1054
    %1121 = vmatpush1.msra.mxu0 %v1053
    %1122 = vmatprep.subr.mxu0 %v1056
    %1123 = vmatpush1.msra.mxu0 %v1055
    %1124 = vmatprep.subr.mxu0 %v1058
    %1125 = vmatpush1.msra.mxu0 %v1057
    %1126 = vmatprep.subr.mxu0 %v1060
    %1127 = vmatpush1.msra.mxu0 %v1059
    %1128 = vmatprep.subr.mxu0 %v1062
    %1129 = vmatpush1.msra.mxu0 %v1061
    %1130 = vmatprep.subr.mxu0 %v1064
    %1131 = vmatpush1.msra.mxu0 %v1063
    %1132 = vmatprep.subr.mxu0 %v1066
    %1133 = vmatpush1.msra.mxu0 %v1065
    %1134 = vmatprep.subr.mxu0 %v1068
    %1135 = vmatpush1.msra.mxu0 %v1067
    %1136 = vmatprep.subr.mxu0 %v1070
    %1137 = vmatpush1.msra.mxu0 %v1069
    %1138 = vmatprep.subr.mxu0 %v1072
    %1139 = vmatpush1.msra.mxu0 %v1071
    %1140 = vmatprep.subr.mxu0 %v1074
    %1141 = vmatpush1.msra.mxu0 %v1073
    %1142 = vmatprep.subr.mxu0 %v1076
    %1143 = vmatpush1.msra.mxu0 %v1075
    %1144 = vmatprep.subr.mxu0 %v1078
    %1145 = vmatpush1.msra.mxu0 %v1077
    %1146 = vmatprep.subr.mxu0 %v1080
    %1147 = vmatpush1.msra.mxu0 %v1079
    %1148 = vmatprep.subr.mxu0 %v1082
    %1149 = vmatpush1.msra.mxu0 %v1081
    %1150 = vmatprep.subr.mxu0 %v1084
    %1151 = vmatpush1.msra.mxu0 %v1083
    %1152 = vmatprep.subr.mxu0 %v1108
    %1153 = vmatpush1.msra.mxu0 %v1105
    %1154 = vmatprep.subr.mxu0 0.0
    %1155 = vmatpush1.msra.mxu0 0.0
    %1156 = vmatprep.subr.mxu0 0.0
    %1157 = vmatpush1.msra.mxu0 0.0
    %1158 = vmatprep.subr.mxu0 0.0
    %1159 = vmatpush1.msra.mxu0 0.0
    %1160 = vmatprep.subr.mxu0 0.0
    %1161 = vmatpush1.msra.mxu0 0.0
    %1162 = vmatprep.subr.mxu0 0.0
    %1163 = vmatpush1.msra.mxu0 0.0
    %1164 = vmatprep.subr.mxu0 0.0
    %1165 = vmatpush1.msra.mxu0 0.0
    %1166 = vmatprep.subr.mxu0 0.0
    %1167 = vmatpush1.msra.mxu0 0.0
    %1168 = vmatprep.subr.mxu0 0.0
    %1169 = vmatpush1.msra.mxu0 0.0
    %1170 = vmatprep.subr.mxu0 0.0
    %1171 = vmatpush1.msra.mxu0 0.0
    %1172 = vmatprep.subr.mxu0 0.0
    %1173 = vmatpush1.msra.mxu0 0.0
    %1174 = vmatprep.mubr.f32.mxu0 %v1101
    %1175 = vmatmul.mubr.f32.gmra.mrb[0].mxu0 %v1041
    %v1176 = vpop.f32.mrb[0].mxu0
    %v1177 = vadd.f32 %v1092, %v1176
    %v1178 = vpop.f32.mrb[0].mxu0
    %v1179 = vadd.f32 %v1096, %v1178
    %1180 = vdwg.mxu0
    %1181 = vst [vmem:[%s14] sm:$0xff] %v1177
    %1182 = vst [vmem:[%s14 + $0x8] sm:$0xff] %v1179
    // Predicated region
    $region66: #{convnet_forward.1} parent=1 // pred_check
      _
    $region67: #{convnet_forward.1} parent=1 // pred_check_branch
      %1184 = sbr.rel (0) target = $region69
    $region68: #{convnet_forward.1} parent=1 // pred_region
      _
    $region69: #{convnet_forward.1} parent=1 // pred_fallthru
      _
    // Predicated region
    $region70: #{convnet_forward.1} parent=1 // pred_check
      _
    $region71: #{convnet_forward.1} parent=1 // pred_check_branch
      %1186 = sbr.rel (0) target = $region73
    $region72: #{convnet_forward.1} parent=1 // pred_region
      _
    $region73: #{convnet_forward.1} parent=1 // pred_fallthru
      _
    %1187 = vsyncpa [#allocation3], 1
    %1188 = vsyncpa [#allocation5], 1

</llo_original>
